<compile_context>
chip_gen: v5e
topology: v5e:2x2
jax: 0.10.0
libtpu: 0.0.40
codegen_flags: <defaults>
</compile_context>

<pallas_src>
import math
from functools import partial

import jax
import jax.numpy as jnp
from jax.experimental import pallas as pl
from jax.experimental.pallas import tpu as pltpu


# --------------------------------------------------------------------------
# small helpers (only ops with rock-solid Mosaic lowerings)
# --------------------------------------------------------------------------
def _sigmoid(x):
    return 1.0 / (1.0 + jnp.exp(-x))


def _softplus(x):
    # stable softplus built from exp/log/abs/max only
    return jnp.maximum(x, 0.0) + jnp.log(1.0 + jnp.exp(-jnp.abs(x)))


def _erf(x):
    # Abramowitz & Stegun 7.1.26, max abs error ~1.5e-7 (float32-accurate).
    t = 1.0 / (1.0 + 0.3275911 * jnp.abs(x))
    poly = t * (0.254829592
                + t * (-0.284496736
                       + t * (1.421413741
                              + t * (-1.453152027 + t * 1.061405429))))
    y = 1.0 - poly * jnp.exp(-x * x)
    return jnp.where(x >= 0.0, y, -y)


def _gelu(x):
    # exact (erf-based) GELU via the A&S erf approximation above
    return 0.5 * x * (1.0 + _erf(x * 0.7071067811865476))


def _pick_rows(n):
    # biggest row tile that divides n (bigger tiles -> closer to HBM roofline)
    for cand in (512, 256, 128, 64, 32, 16, 8):
        if n % cand == 0:
            return cand
    return n  # falls back to a single full block (fine at the shapes used here)


def _pick_chunk(L):
    for cand in (16, 8, 4, 2):
        if L % cand == 0:
            return cand
    return 1


# --------------------------------------------------------------------------
# generic row-tiled matmul (+ bias, + optional activation) kernel
# --------------------------------------------------------------------------
def _matmul_kernel(x_ref, w_ref, b_ref, o_ref, *, act):
    x = x_ref[...].astype(jnp.float32)
    w = w_ref[...].astype(jnp.float32)
    k = x.shape[1]
    if k < 8:  # tiny contraction (e.g. TCA 1x1 conv2): broadcast multiply-add
        acc = jnp.zeros((x.shape[0], w.shape[1]), jnp.float32)
        for kk in range(k):
            acc = acc + x[:, kk:kk + 1] * w[kk:kk + 1, :]
    else:
        acc = jnp.dot(x, w, preferred_element_type=jnp.float32)
    acc = acc + b_ref[...].astype(jnp.float32)
    if act == "relu":
        acc = jnp.maximum(acc, 0.0)
    elif act == "sigmoid":
        acc = _sigmoid(acc)
    o_ref[...] = acc.astype(o_ref.dtype)


def pallas_matmul(x, w, b=None, act=None):
    n, k = x.shape
    m = w.shape[1]
    if b is None:
        b = jnp.zeros((m,), jnp.float32)
    bn = _pick_rows(n)
    return pl.pallas_call(
        partial(_matmul_kernel, act=act),
        out_shape=jax.ShapeDtypeStruct((n, m), jnp.float32),
        grid_spec=pltpu.PrefetchScalarGridSpec(
            num_scalar_prefetch=0,
            grid=(n // bn,),
            in_specs=[
                pl.BlockSpec((bn, k), lambda i: (i, 0)),
                pl.BlockSpec((k, m), lambda i: (0, 0)),
                pl.BlockSpec((1, m), lambda i: (0, 0)),
            ],
            out_specs=pl.BlockSpec((bn, m), lambda i: (i, 0)),
        ),
        compiler_params=pltpu.CompilerParams(dimension_semantics=("parallel",)),
    )(x, w, b.reshape(1, m))


# --------------------------------------------------------------------------
# LayerNorm fused into the following matmul (ln1->in_proj, ln2->fc1)
# --------------------------------------------------------------------------
def _ln_matmul_kernel(x_ref, g_ref, bln_ref, w_ref, b_ref, o_ref, *, act):
    x = x_ref[...].astype(jnp.float32)
    mu = jnp.mean(x, axis=-1, keepdims=True)
    xc = x - mu
    var = jnp.mean(xc * xc, axis=-1, keepdims=True)
    xn = xc * jax.lax.rsqrt(var + 1e-5) * g_ref[...] + bln_ref[...]
    acc = jnp.dot(xn, w_ref[...].astype(jnp.float32),
                  preferred_element_type=jnp.float32)
    acc = acc + b_ref[...].astype(jnp.float32)
    if act == "relu":
        acc = jnp.maximum(acc, 0.0)
    o_ref[...] = acc.astype(o_ref.dtype)


def pallas_ln_matmul(x, gamma, beta, w, b=None, act=None):
    n, k = x.shape
    m = w.shape[1]
    if b is None:
        b = jnp.zeros((m,), jnp.float32)
    bn = _pick_rows(n)
    return pl.pallas_call(
        partial(_ln_matmul_kernel, act=act),
        out_shape=jax.ShapeDtypeStruct((n, m), jnp.float32),
        grid_spec=pltpu.PrefetchScalarGridSpec(
            num_scalar_prefetch=0,
            grid=(n // bn,),
            in_specs=[
                pl.BlockSpec((bn, k), lambda i: (i, 0)),
                pl.BlockSpec((1, k), lambda i: (0, 0)),
                pl.BlockSpec((1, k), lambda i: (0, 0)),
                pl.BlockSpec((k, m), lambda i: (0, 0)),
                pl.BlockSpec((1, m), lambda i: (0, 0)),
            ],
            out_specs=pl.BlockSpec((bn, m), lambda i: (i, 0)),
        ),
        compiler_params=pltpu.CompilerParams(dimension_semantics=("parallel",)),
    )(x, gamma.reshape(1, k), beta.reshape(1, k), w, b.reshape(1, m))


# --------------------------------------------------------------------------
# depthwise conv1d (+ SiLU) used inside Mamba.  `reverse=False` gives the
# causal conv (left pad), `reverse=True` the anti-causal conv with reversed
# taps (equivalent to flip -> causal conv -> flip, without the HBM flips).
# Padding is handled in-kernel (no jnp.pad materialization in HBM).
# --------------------------------------------------------------------------
def _dwconv1d_silu_kernel(x_ref, w_ref, b_ref, o_ref, *, reverse):
    L, d = o_ref.shape
    K = w_ref.shape[0]
    x = x_ref[...].astype(jnp.float32)
    acc = x * w_ref[K - 1:K, :] + b_ref[...]          # zero-shift tap
    for k in range(K - 1):
        s = K - 1 - k                                  # temporal shift of tap k
        wk = w_ref[k:k + 1, :]
        if reverse:
            shifted = jnp.concatenate(
                [x[s:, :] * wk, jnp.zeros((s, d), jnp.float32)], axis=0)
        else:
            shifted = jnp.concatenate(
                [jnp.zeros((s, d), jnp.float32), x[:L - s, :] * wk], axis=0)
        acc = acc + shifted
    o_ref[...] = (acc * _sigmoid(acc)).astype(o_ref.dtype)


def pallas_dwconv1d_silu(x, w, b, *, reverse):
    bsz, L, d = x.shape
    K = w.shape[0]
    return pl.pallas_call(
        partial(_dwconv1d_silu_kernel, reverse=reverse),
        out_shape=jax.ShapeDtypeStruct((bsz, L, d), jnp.float32),
        grid_spec=pltpu.PrefetchScalarGridSpec(
            num_scalar_prefetch=0,
            grid=(bsz,),
            in_specs=[
                pl.BlockSpec((None, L, d), lambda i: (i, 0, 0)),
                pl.BlockSpec((K, d), lambda i: (0, 0)),
                pl.BlockSpec((1, d), lambda i: (0, 0)),
            ],
            out_specs=pl.BlockSpec((None, L, d), lambda i: (i, 0, 0)),
        ),
        compiler_params=pltpu.CompilerParams(dimension_semantics=("parallel",)),
    )(x, w, b.reshape(1, d))


# --------------------------------------------------------------------------
# chunked selective SSM scan kernel
#   - softplus(dt), dA = exp(At*dt), dBu, the C.h reduction and the SiLU(z)
#     gate are all vectorized over a chunk of T timesteps
#   - the serial loop only carries h = dA*h + dBu
#   - `reverse=True` scans t from L-1 down to 0 and writes outputs at the
#     original indices, so no jnp.flip is needed anywhere
# --------------------------------------------------------------------------
def _selective_scan_kernel(u_ref, dt_ref, b_ref, c_ref, z_ref, at_ref, d_ref,
                           dtb_ref, o_ref, *, reverse, chunk):
    L, d_inner = u_ref.shape
    d_state = at_ref.shape[0]
    T = chunk
    NC = L // T

    At = at_ref[...]                                   # (d_state, d_inner)
    At_b = jnp.broadcast_to(At[None, :, :], (T, d_state, d_inner))  # hoisted
    Dv = d_ref[...]                                    # (1, d_inner)
    dtb = dtb_ref[...]                                 # (1, d_inner)

    def chunk_body(ci, h):
        if reverse:
            base = L - (ci + 1) * T
        else:
            base = ci * T
        base = pl.multiple_of(base, T)

        u_c = u_ref[pl.ds(base, T), :].astype(jnp.float32)     # (T, d_inner)
        dt_c = _softplus(dt_ref[pl.ds(base, T), :].astype(jnp.float32) + dtb)
        b_c = b_ref[pl.ds(base, T), :].astype(jnp.float32)     # (T, d_state)
        c_c = c_ref[pl.ds(base, T), :].astype(jnp.float32)     # (T, d_state)
        z_c = z_ref[pl.ds(base, T), :].astype(jnp.float32)     # (T, d_inner)

        dA_c = jnp.exp(dt_c[:, None, :] * At_b)                # (T, S, D)
        dBu_c = b_c[:, :, None] * (dt_c * u_c)[:, None, :]     # (T, S, D)

        # serial recurrence only (2 VPU ops / step); everything else is batched
        h_rows = [None] * T
        steps = range(T - 1, -1, -1) if reverse else range(T)
        for t in steps:
            h = dA_c[t] * h + dBu_c[t]
            h_rows[t] = h
        H_c = jnp.stack(h_rows, axis=0)                        # (T, S, D)

        y_c = jnp.sum(c_c[:, :, None] * H_c, axis=1)           # VPU reduction
        y_c = y_c + Dv * u_c
        y_c = y_c * z_c * _sigmoid(z_c)                        # SiLU(z) gate
        o_ref[pl.ds(base, T), :] = y_c.astype(o_ref.dtype)     # dense tile store
        return h

    jax.lax.fori_loop(0, NC, chunk_body,
                      jnp.zeros((d_state, d_inner), jnp.float32))


def pallas_selective_scan(u, dt, Bm, Cm, z, At, D, dt_bias, *, reverse):
    bsz, L, d_inner = u.shape
    d_state = Bm.shape[-1]
    chunk = _pick_chunk(L)
    # TODO(synk): for d_inner < 128 the lane dim is still half-empty; folding
    # batch into the lane axis would double VPU/EUP utilization of the scan.
    return pl.pallas_call(
        partial(_selective_scan_kernel, reverse=reverse, chunk=chunk),
        out_shape=jax.ShapeDtypeStruct((bsz, L, d_inner), jnp.float32),
        grid_spec=pltpu.PrefetchScalarGridSpec(
            num_scalar_prefetch=0,
            grid=(bsz,),
            in_specs=[
                pl.BlockSpec((None, L, d_inner), lambda i: (i, 0, 0)),   # u
                pl.BlockSpec((None, L, d_inner), lambda i: (i, 0, 0)),   # dt
                pl.BlockSpec((None, L, d_state), lambda i: (i, 0, 0)),   # B
                pl.BlockSpec((None, L, d_state), lambda i: (i, 0, 0)),   # C
                pl.BlockSpec((None, L, d_inner), lambda i: (i, 0, 0)),   # z
                pl.BlockSpec((d_state, d_inner), lambda i: (0, 0)),      # A^T
                pl.BlockSpec((1, d_inner), lambda i: (0, 0)),            # D
                pl.BlockSpec((1, d_inner), lambda i: (0, 0)),            # dt bias
            ],
            out_specs=pl.BlockSpec((None, L, d_inner), lambda i: (i, 0, 0)),
        ),
        # batch axis is independent (recurrence lives inside the kernel) ->
        # "parallel" lets v7x shard the grid across its two TensorCores.
        compiler_params=pltpu.CompilerParams(dimension_semantics=("parallel",)),
    )(u, dt, Bm, Cm, z, At, D.reshape(1, d_inner), dt_bias.reshape(1, d_inner))


# --------------------------------------------------------------------------
# depthwise 3x3x3 Conv3d (groups=dim, padding=1) + fused exact-GELU epilogue
# --------------------------------------------------------------------------
def _dwconv3d_gelu_kernel(xp_ref, w_ref, b_ref, o_ref):
    nf, hh, ww, c = o_ref.shape
    acc = jnp.zeros((nf, hh, ww, c), jnp.float32)
    tap = 0
    # TODO(synk): the 27 shifted slices relayout the full volume on the
    # VPU/XLU; a roll+mask formulation (and spatial tiling with halo for
    # large dims / v7x's 64 MiB VMEM) would cut this further.
    for kd in range(3):
        for kh in range(3):
            for kw in range(3):
                acc = acc + xp_ref[kd:kd + nf, kh:kh + hh, kw:kw + ww, :].astype(
                    jnp.float32) * w_ref[tap:tap + 1, :]
                tap += 1
    acc = acc + b_ref[...]
    o_ref[...] = _gelu(acc).astype(o_ref.dtype)


def pallas_dwconv3d_gelu(x, w27, b):
    bsz, nf, hh, ww, c = x.shape
    # TODO(synk): the (1,1,1) halo pad is still a wrapper-side HBM copy; moving
    # it into a zero-initialized VMEM scratch would remove one HBM round trip.
    xp = jnp.pad(x, ((0, 0), (1, 1), (1, 1), (1, 1), (0, 0)))
    return pl.pallas_call(
        _dwconv3d_gelu_kernel,
        out_shape=jax.ShapeDtypeStruct((bsz, nf, hh, ww, c), jnp.float32),
        grid_spec=pltpu.PrefetchScalarGridSpec(
            num_scalar_prefetch=0,
            grid=(bsz,),
            in_specs=[
                pl.BlockSpec((None, nf + 2, hh + 2, ww + 2, c),
                             lambda i: (i, 0, 0, 0, 0)),
                pl.BlockSpec((27, c), lambda i: (0, 0)),
                pl.BlockSpec((1, c), lambda i: (0, 0)),
            ],
            out_specs=pl.BlockSpec((None, nf, hh, ww, c),
                                   lambda i: (i, 0, 0, 0, 0)),
        ),
        compiler_params=pltpu.CompilerParams(dimension_semantics=("parallel",)),
    )(xp, w27, b.reshape(1, c))


# --------------------------------------------------------------------------
# TCA: temporal max/avg pool (k=3, pad=1) + spatial mean + diff, in one kernel
# --------------------------------------------------------------------------
def _tca_pool_kernel(x_ref, o_ref):
    nf, hh, ww, c = x_ref.shape

    def smean(a):
        return jnp.mean(a.reshape(hh * ww, c), axis=0, keepdims=True)

    mp_rows, ap_rows = [], []
    for f in range(nf):
        lo, hi = max(0, f - 1), min(nf, f + 2)
        frames = [x_ref[g].astype(jnp.float32) for g in range(lo, hi)]
        fmax, fsum = frames[0], frames[0]
        for fr in frames[1:]:
            fmax = jnp.maximum(fmax, fr)
            fsum = fsum + fr
        mp_rows.append(smean(fmax))                # MaxPool3d pads with -inf
        ap_rows.append(smean(fsum) * (1.0 / 3.0))  # AvgPool3d count_include_pad
    mp = jnp.concatenate(mp_rows, axis=0)
    ap = jnp.concatenate(ap_rows, axis=0)
    o_ref[...] = (mp - ap).astype(o_ref.dtype)


def pallas_tca_pool(x):
    bsz, nf, hh, ww, c = x.shape
    return pl.pallas_call(
        _tca_pool_kernel,
        out_shape=jax.ShapeDtypeStruct((bsz, nf, c), jnp.float32),
        grid_spec=pltpu.PrefetchScalarGridSpec(
            num_scalar_prefetch=0,
            grid=(bsz,),
            in_specs=[pl.BlockSpec((None, nf, hh, ww, c),
                                   lambda i: (i, 0, 0, 0, 0))],
            out_specs=pl.BlockSpec((None, nf, c), lambda i: (i, 0, 0)),
        ),
        compiler_params=pltpu.CompilerParams(dimension_semantics=("parallel",)),
    )(x)


# --------------------------------------------------------------------------
# fused TCA application:  x * attn + x  with attn broadcast per (batch,frame)
# (no (B*L, C) attention tensor materialized in HBM)
# --------------------------------------------------------------------------
def _tca_apply_kernel(x_ref, a_ref, o_ref):
    o_ref[...] = (x_ref[...] * (a_ref[...] + 1.0)).astype(o_ref.dtype)


def pallas_tca_apply(x, attn):
    nb, hw, c = x.shape                       # nb = B * nf
    attn3 = attn.reshape(nb, 1, c)
    return pl.pallas_call(
        _tca_apply_kernel,
        out_shape=jax.ShapeDtypeStruct((nb, hw, c), jnp.float32),
        grid_spec=pltpu.PrefetchScalarGridSpec(
            num_scalar_prefetch=0,
            grid=(nb,),
            in_specs=[pl.BlockSpec((None, hw, c), lambda i: (i, 0, 0)),
                      pl.BlockSpec((None, 1, c), lambda i: (i, 0, 0))],
            out_specs=pl.BlockSpec((None, hw, c), lambda i: (i, 0, 0)),
        ),
        compiler_params=pltpu.CompilerParams(dimension_semantics=("parallel",)),
    )(x, attn3)


# --------------------------------------------------------------------------
# Mamba block (bidirectional selective SSM) -- all flips removed
# --------------------------------------------------------------------------
def mamba_forward(x2d, B, L, params):
    mp = params["mamba"]
    C = x2d.shape[1]
    d_inner = mp["fwd"]["D"].shape[0]
    d_state = mp["fwd"]["At"].shape[0]

    # norm1 fused into the in_proj GEMM
    xz = pallas_ln_matmul(x2d, params["ln1_g"], params["ln1_b"],
                          mp["in_proj_w"])                     # (B*L, 2*d_inner)
    xz = xz.reshape(B, L, 2 * d_inner)
    x_in, z = xz[..., :d_inner], xz[..., d_inner:]

    def run_dir(pb, reverse):
        xc = pallas_dwconv1d_silu(x_in, pb["conv_w"], pb["conv_b"],
                                  reverse=reverse)
        proj = pallas_matmul(xc.reshape(B * L, d_inner), pb["proj_w"])
        proj = proj.reshape(B, L, d_inner + 2 * d_state)
        dt = proj[..., :d_inner]
        Bm = proj[..., d_inner:d_inner + d_state]
        Cm = proj[..., d_inner + d_state:]
        return pallas_selective_scan(xc, dt, Bm, Cm, z, pb["At"], pb["D"],
                                     pb["dt_bias"], reverse=reverse)

    # TODO(synk): mamba_ssm's bimamba_type='v3-b' internals are not public;
    # implemented as a standard bidirectional selective SSM (forward branch +
    # backward branch with independent params, summed before out_proj).
    y = run_dir(mp["fwd"], False) + run_dir(mp["bwd"], True)
    out = pallas_matmul(y.reshape(B * L, d_inner), mp["out_proj_w"])
    return out.reshape(B, L, C)


# --------------------------------------------------------------------------
# full MambaLayer forward
# --------------------------------------------------------------------------
def mamba_layer_forward(x, params):
    # input is PyTorch NCDHW (B, C, nf, H, W); kernels run channel-last.
    B, C, nf, H, W = x.shape
    L = nf * H * W
    hidden = params["fc1_w"].shape[1]

    x_cl = jnp.transpose(x, (0, 2, 3, 4, 1))              # (B, nf, H, W, C)
    x_flat = x_cl.reshape(B, L, C)                        # tokens, channel-last

    # ---- x + Mamba(norm1(x))  (norm1 fused into in_proj) ---------------------
    x_mamba = x_flat + mamba_forward(x_flat.reshape(B * L, C), B, L, params)

    # ---- x + Mlp(norm2(x))    (norm2 fused into fc1, GELU fused into dwconv) -
    h = pallas_ln_matmul(x_mamba.reshape(B * L, C),
                         params["ln2_g"], params["ln2_b"],
                         params["fc1_w"], params["fc1_b"])
    h = pallas_dwconv3d_gelu(h.reshape(B, nf, H, W, hidden),
                             params["dw_w"], params["dw_b"])
    mlp_out = pallas_matmul(h.reshape(B * L, hidden),
                            params["fc2_w"], params["fc2_b"])
    x_mamba = x_mamba + mlp_out.reshape(B, L, C)

    # ---- TCA ------------------------------------------------------------------
    out_cl = x_mamba.reshape(B, nf, H, W, C)
    diff = pallas_tca_pool(out_cl)                                     # (B, nf, C)
    a = pallas_matmul(diff.reshape(B * nf, C), params["tca_w1"],
                      params["tca_b1"], act="relu")
    attn = pallas_matmul(a, params["tca_w2"], params["tca_b2"], act="sigmoid")
    out_tok = pallas_tca_apply(x_mamba.reshape(B * nf, H * W, C), attn)
    out_cl = out_tok.reshape(B, nf, H, W, C)
    return jnp.transpose(out_cl, (0, 4, 1, 2, 3))          # (B, C, nf, H, W)


# --------------------------------------------------------------------------
# deterministic synthetic parameter init (shapes follow the torch __init__;
# all projection weights are stored pre-transposed as (K, M) so no .T / XLA
# transpose is inserted at forward time)
# --------------------------------------------------------------------------
def init_params(key, dim, d_state=16, d_conv=4, expand=2, mlp_ratio=4):
    d_inner = expand * dim
    dt_rank = math.ceil(dim / 16)
    hidden = int(dim * mlp_ratio)
    keys = jax.random.split(key, 16)

    def dense(k, shape, scale=0.02):
        return scale * jax.random.normal(k, shape, dtype=jnp.float32)

    def make_dir(k):
        k1, k2, k3 = jax.random.split(k, 3)
        conv_w = dense(k1, (d_conv, d_inner), 0.2)      # torch (d_inner,1,K) -> (K,d_inner)
        conv_b = jnp.zeros((d_inner,), jnp.float32)
        x_proj_w = dense(k2, (dt_rank + 2 * d_state, d_inner), 0.05)
        dt_proj_w = dense(k3, (d_inner, dt_rank), 0.5)
        # fold the low-rank dt path (dt_proj @ x_proj[:dt_rank]) into one linear
        w_dt_eff = dt_proj_w @ x_proj_w[:dt_rank, :]
        proj_w = jnp.concatenate([w_dt_eff, x_proj_w[dt_rank:]], axis=0).T
        dt_bias = jnp.full((d_inner,), -3.0, jnp.float32)
        A = -jnp.tile(jnp.arange(1, d_state + 1, dtype=jnp.float32)[None, :],
                      (d_inner, 1))                      # A = -exp(A_log)
        return dict(conv_w=conv_w, conv_b=conv_b, proj_w=proj_w,
                    dt_bias=dt_bias, At=A.T,
                    D=jnp.ones((d_inner,), jnp.float32))

    return dict(
        ln1_g=jnp.ones((dim,), jnp.float32), ln1_b=jnp.zeros((dim,), jnp.float32),
        ln2_g=jnp.ones((dim,), jnp.float32), ln2_b=jnp.zeros((dim,), jnp.float32),
        mamba=dict(
            in_proj_w=dense(keys[0], (2 * d_inner, dim)).T,   # (dim, 2*d_inner)
            out_proj_w=dense(keys[1], (dim, d_inner)).T,      # (d_inner, dim)
            fwd=make_dir(keys[2]),
            bwd=make_dir(keys[3]),
        ),
        fc1_w=dense(keys[4], (hidden, dim)).T,                # (dim, hidden)
        fc1_b=jnp.zeros((hidden,), jnp.float32),
        dw_w=dense(keys[5], (27, hidden), 0.2),               # torch (hidden,1,3,3,3) -> (27,hidden)
        dw_b=jnp.zeros((hidden,), jnp.float32),
        fc2_w=dense(keys[6], (dim, hidden)).T,                # (hidden, dim)
        fc2_b=jnp.zeros((dim,), jnp.float32),
        tca_w1=dense(keys[7], (dim // 16, dim), 0.2).T,       # (dim, dim//16)
        tca_b1=jnp.zeros((dim // 16,), jnp.float32),
        tca_w2=dense(keys[8], (dim, dim // 16), 0.2).T,       # (dim//16, dim)
        tca_b2=jnp.zeros((dim,), jnp.float32),
    )
    # note: skip_scale / skip_scale2 / skip_scale3 / norm3 are declared in the
    # torch module but never used in its forward(), so they are omitted here.


# --------------------------------------------------------------------------
if __name__ == "__main__":
    B, dim, nf, H, W = 2, 32, 4, 8, 8
    params = init_params(jax.random.PRNGKey(1), dim)
    x = jax.random.normal(jax.random.PRNGKey(0), (B, dim, nf, H, W),
                          dtype=jnp.float32)

    out = mamba_layer_forward(x, params)
    out = jax.block_until_ready(out)

    assert out.shape == (B, dim, nf, H, W), out.shape
    assert bool(jnp.all(jnp.isfinite(out)))
    print("KERNEL_OK")
</pallas_src>

<mosaic_0001>
module attributes {stable_mosaic.version = 11 : i64} {
  func.func @_ln_matmul_kernel(%arg0: i32, %arg1: memref<512x32xf32, #tpu.memory_space<vmem>>, %arg2: memref<1x32xf32, #tpu.memory_space<vmem>>, %arg3: memref<1x32xf32, #tpu.memory_space<vmem>>, %arg4: memref<32x128xf32, #tpu.memory_space<vmem>>, %arg5: memref<1x128xf32, #tpu.memory_space<vmem>>, %arg6: memref<512x128xf32, #tpu.memory_space<vmem>>) attributes {dimension_semantics = [#tpu.dimension_semantics<parallel>], iteration_bounds = array<i64: 1>, scalar_prefetch = 0 : i64, scratch_operands = 0 : i64, tpu.core_type = #tpu.core_type<tc>, window_params = [{transform_indices = @transform_0, window_bounds = array<i64: 512, 32>}, {pipeline_mode = #tpu.pipeline_mode<synchronous>, transform_indices = @transform_1, window_bounds = array<i64: 1, 32>}, {pipeline_mode = #tpu.pipeline_mode<synchronous>, transform_indices = @transform_2, window_bounds = array<i64: 1, 32>}, {pipeline_mode = #tpu.pipeline_mode<synchronous>, transform_indices = @transform_3, window_bounds = array<i64: 32, 128>}, {pipeline_mode = #tpu.pipeline_mode<synchronous>, transform_indices = @transform_4, window_bounds = array<i64: 1, 128>}, {transform_indices = @transform_5, window_bounds = array<i64: 512, 128>}]} {
    %c0 = arith.constant 0 : index
    %c0_0 = arith.constant 0 : index
    %0 = vector.load %arg1[%c0, %c0_0] : memref<512x32xf32, #tpu.memory_space<vmem>>, vector<512x32xf32>
    %cst = arith.constant dense<0.000000e+00> : vector<512xf32>
    %1 = vector.multi_reduction <add>, %0, %cst [1] : vector<512x32xf32> to vector<512xf32>
    %2 = vector.shape_cast %1 : vector<512xf32> to vector<512x1xf32>
    %cst_1 = arith.constant 3.200000e+01 : f32
    %3 = vector.broadcast %cst_1 : f32 to vector<512x1xf32>
    %4 = arith.divf %2, %3 : vector<512x1xf32>
    %5 = vector.broadcast %4 : vector<512x1xf32> to vector<512x32xf32>
    %6 = arith.subf %0, %5 : vector<512x32xf32>
    %7 = arith.mulf %6, %6 : vector<512x32xf32>
    %cst_2 = arith.constant dense<0.000000e+00> : vector<512xf32>
    %8 = vector.multi_reduction <add>, %7, %cst_2 [1] : vector<512x32xf32> to vector<512xf32>
    %9 = vector.shape_cast %8 : vector<512xf32> to vector<512x1xf32>
    %cst_3 = arith.constant 3.200000e+01 : f32
    %10 = vector.broadcast %cst_3 : f32 to vector<512x1xf32>
    %11 = arith.divf %9, %10 : vector<512x1xf32>
    %cst_4 = arith.constant 9.99999974E-6 : f32
    %12 = vector.broadcast %cst_4 : f32 to vector<512x1xf32>
    %13 = arith.addf %11, %12 : vector<512x1xf32>
    %14 = math.rsqrt %13 : vector<512x1xf32>
    %15 = vector.broadcast %14 : vector<512x1xf32> to vector<512x32xf32>
    %16 = arith.mulf %6, %15 : vector<512x32xf32>
    %c0_5 = arith.constant 0 : index
    %c0_6 = arith.constant 0 : index
    %17 = vector.load %arg2[%c0_5, %c0_6] : memref<1x32xf32, #tpu.memory_space<vmem>>, vector<1x32xf32>
    %18 = vector.broadcast %17 : vector<1x32xf32> to vector<512x32xf32>
    %19 = arith.mulf %16, %18 : vector<512x32xf32>
    %c0_7 = arith.constant 0 : index
    %c0_8 = arith.constant 0 : index
    %20 = vector.load %arg3[%c0_7, %c0_8] : memref<1x32xf32, #tpu.memory_space<vmem>>, vector<1x32xf32>
    %21 = vector.broadcast %20 : vector<1x32xf32> to vector<512x32xf32>
    %22 = arith.addf %19, %21 : vector<512x32xf32>
    %c0_9 = arith.constant 0 : index
    %c0_10 = arith.constant 0 : index
    %23 = vector.load %arg4[%c0_9, %c0_10] : memref<32x128xf32, #tpu.memory_space<vmem>>, vector<32x128xf32>
    %cst_11 = arith.constant dense<0.000000e+00> : vector<512x128xf32>
    %24 = tpu.matmul %22, %23, %cst_11 {dimension_numbers = #tpu.dot_dimension_numbers<[1], [0], [0], [1], [0, 0, 1, 1], [], []>} : vector<512x32xf32>, vector<32x128xf32>, vector<512x128xf32> -> vector<512x128xf32>
    %c0_12 = arith.constant 0 : index
    %c0_13 = arith.constant 0 : index
    %25 = vector.load %arg5[%c0_12, %c0_13] : memref<1x128xf32, #tpu.memory_space<vmem>>, vector<1x128xf32>
    %26 = vector.broadcast %25 : vector<1x128xf32> to vector<512x128xf32>
    %27 = arith.addf %24, %26 : vector<512x128xf32>
    %c0_14 = arith.constant 0 : index
    %c0_15 = arith.constant 0 : index
    %28 = vector.load %arg6[%c0_14, %c0_15] : memref<512x128xf32, #tpu.memory_space<vmem>>, vector<512x128xf32>
    tpu.vector_store %arg6[%c0_14, %c0_15], %27 {strides = array<i32>} : memref<512x128xf32, #tpu.memory_space<vmem>>, vector<512x128xf32>,
    return
  }
  func.func @transform_0(%arg0: i32) -> (i32, i32) {
    %c0_i32 = arith.constant 0 : i32
    %c0_i32_0 = arith.constant 0 : i32
    return %arg0, %c0_i32 : i32, i32
  }
  func.func @transform_1(%arg0: i32) -> (i32, i32) {
    %c0_i32 = arith.constant 0 : i32
    %c0_i32_0 = arith.constant 0 : i32
    %c0_i32_1 = arith.constant 0 : i32
    return %c0_i32, %c0_i32_0 : i32, i32
  }
  func.func @transform_2(%arg0: i32) -> (i32, i32) {
    %c0_i32 = arith.constant 0 : i32
    %c0_i32_0 = arith.constant 0 : i32
    %c0_i32_1 = arith.constant 0 : i32
    return %c0_i32, %c0_i32_0 : i32, i32
  }
  func.func @transform_3(%arg0: i32) -> (i32, i32) {
    %c0_i32 = arith.constant 0 : i32
    %c0_i32_0 = arith.constant 0 : i32
    %c0_i32_1 = arith.constant 0 : i32
    return %c0_i32, %c0_i32_0 : i32, i32
  }
  func.func @transform_4(%arg0: i32) -> (i32, i32) {
    %c0_i32 = arith.constant 0 : i32
    %c0_i32_0 = arith.constant 0 : i32
    %c0_i32_1 = arith.constant 0 : i32
    return %c0_i32, %c0_i32_0 : i32, i32
  }
  func.func @transform_5(%arg0: i32) -> (i32, i32) {
    %c0_i32 = arith.constant 0 : i32
    %c0_i32_0 = arith.constant 0 : i32
    return %arg0, %c0_i32 : i32, i32
  }
}

</mosaic_0001>

<llo_original>
// kernel: tpu_custom_call.1
$region0: #{tpu_custom_call.1}
  #allocation0 [shape = 'u32[]', space=smem, size = 0x4, offset = 0x4, fixed_abs, tag = 'smem constant byte address 0x4 - core index']
  #allocation1 [shape = 'u32[72,128]{1,0:T(1,128)}', space=vmem, size = 0x9000, scoped, tag = 'internal scratch']
  %s0 = inlined_call_operand.vmem [shape: f32[512,32], index: 0, kind: input, shape index: {}]
  %s1 = inlined_call_operand.vmem [shape: f32[1,32], index: 1, kind: input, shape index: {}]
  %s2 = inlined_call_operand.vmem [shape: f32[1,32], index: 2, kind: input, shape index: {}]
  %s3 = inlined_call_operand.vmem [shape: f32[32,128], index: 3, kind: input, shape index: {}]
  %s4 = inlined_call_operand.vmem [shape: f32[1,128], index: 4, kind: input, shape index: {}]
  %s5 = inlined_call_operand.hbm [shape: f32[512,128], index: 5, kind: output, shape index: {}]
  %s6 = sld [smem:[#allocation0]]
  $region30: #{tpu_custom_call.1} parent=0
    _
  %s8 = ssub.s32 1, %s6
  %s9 = scalar_select 0, %s8, %s6
  $region1: #{tpu_custom_call.1} parent=0
    #allocation2 [shape = 'u8[262144]{0}', space=vmem, size = 0x40000, scoped, tag = 'output window, operand 0, single buffered']
    #allocation3 [shape = 's32[1]{0}', space=sflag, size = 0x4, scoped, tag = 'scoped memory for tpu_custom_call.1']
    %10 = vsyncpa [#allocation3], 0
    // Predicated region
    $region2: #{tpu_custom_call.1} parent=1 // pred_check
      _
    $region3: #{tpu_custom_call.1} parent=1 // pred_check_branch
      %12 = sbr.rel (0) target = $region5
    $region4: #{tpu_custom_call.1} parent=1 // pred_region
      _
    $region5: #{tpu_custom_call.1} parent=1 // pred_fallthru
      _
    // Predicated region
    $region6: #{tpu_custom_call.1} parent=1 // pred_check
      _
    $region7: #{tpu_custom_call.1} parent=1 // pred_check_branch
      %14 = sbr.rel (0) target = $region9
    $region8: #{tpu_custom_call.1} parent=1 // pred_region
      _
    $region9: #{tpu_custom_call.1} parent=1 // pred_fallthru
      _
    // Predicated region
    $region10: #{tpu_custom_call.1} parent=1 // pred_check
      _
    $region11: #{tpu_custom_call.1} parent=1 // pred_check_branch
      %16 = sbr.rel (0) target = $region13
    $region12: #{tpu_custom_call.1} parent=1 // pred_region
      _
    $region13: #{tpu_custom_call.1} parent=1 // pred_fallthru
      _
    // Predicated region
    $region14: #{tpu_custom_call.1} parent=1 // pred_check
      _
    $region15: #{tpu_custom_call.1} parent=1 // pred_check_branch
      %18 = sbr.rel (0) target = $region17
    $region16: #{tpu_custom_call.1} parent=1 // pred_region
      _
    $region17: #{tpu_custom_call.1} parent=1 // pred_fallthru
      _
    // Predicated region
    $region18: #{tpu_custom_call.1} parent=1 // pred_check
      _
    $region19: #{tpu_custom_call.1} parent=1 // pred_check_branch
      %20 = sbr.rel (0) target = $region21
    $region20: #{tpu_custom_call.1} parent=1 // pred_region
      _
    $region21: #{tpu_custom_call.1} parent=1 // pred_fallthru
      _
    %v21 = vld [vmem:[%s0] sm:$0xff]
    %v22 = vld [vmem:[%s0 + $0x8] sm:$0xff]
    %v23 = vld [vmem:[%s0 + $0x10] sm:$0xff]
    %v24 = vld [vmem:[%s0 + $0x18] sm:$0xff]
    %v25 = vld [vmem:[%s0 + $0x20] sm:$0xff]
    %v26 = vld [vmem:[%s0 + $0x28] sm:$0xff]
    %v27 = vld [vmem:[%s0 + $0x30] sm:$0xff]
    %v28 = vld [vmem:[%s0 + $0x38] sm:$0xff]
    %v29 = vld [vmem:[%s0 + $0x40] sm:$0xff]
    %v30 = vld [vmem:[%s0 + $0x48] sm:$0xff]
    %v31 = vld [vmem:[%s0 + $0x50] sm:$0xff]
    %v32 = vld [vmem:[%s0 + $0x58] sm:$0xff]
    %v33 = vld [vmem:[%s0 + $0x60] sm:$0xff]
    %v34 = vld [vmem:[%s0 + $0x68] sm:$0xff]
    %v35 = vld [vmem:[%s0 + $0x70] sm:$0xff]
    %v36 = vld [vmem:[%s0 + $0x78] sm:$0xff]
    %v37 = vld [vmem:[%s0 + $0x80] sm:$0xff]
    %v38 = vld [vmem:[%s0 + $0x88] sm:$0xff]
    %v39 = vld [vmem:[%s0 + $0x90] sm:$0xff]
    %v40 = vld [vmem:[%s0 + $0x98] sm:$0xff]
    %v41 = vld [vmem:[%s0 + $0xa0] sm:$0xff]
    %v42 = vld [vmem:[%s0 + $0xa8] sm:$0xff]
    %v43 = vld [vmem:[%s0 + $0xb0] sm:$0xff]
    %v44 = vld [vmem:[%s0 + $0xb8] sm:$0xff]
    %v45 = vld [vmem:[%s0 + $0xc0] sm:$0xff]
    %v46 = vld [vmem:[%s0 + $0xc8] sm:$0xff]
    %v47 = vld [vmem:[%s0 + $0xd0] sm:$0xff]
    %v48 = vld [vmem:[%s0 + $0xd8] sm:$0xff]
    %v49 = vld [vmem:[%s0 + $0xe0] sm:$0xff]
    %v50 = vld [vmem:[%s0 + $0xe8] sm:$0xff]
    %v51 = vld [vmem:[%s0 + $0xf0] sm:$0xff]
    %v52 = vld [vmem:[%s0 + $0xf8] sm:$0xff]
    %v53 = vld [vmem:[%s0 + $0x100] sm:$0xff]
    %v54 = vld [vmem:[%s0 + $0x108] sm:$0xff]
    %v55 = vld [vmem:[%s0 + $0x110] sm:$0xff]
    %v56 = vld [vmem:[%s0 + $0x118] sm:$0xff]
    %v57 = vld [vmem:[%s0 + $0x120] sm:$0xff]
    %v58 = vld [vmem:[%s0 + $0x128] sm:$0xff]
    %v59 = vld [vmem:[%s0 + $0x130] sm:$0xff]
    %v60 = vld [vmem:[%s0 + $0x138] sm:$0xff]
    %v61 = vld [vmem:[%s0 + $0x140] sm:$0xff]
    %v62 = vld [vmem:[%s0 + $0x148] sm:$0xff]
    %v63 = vld [vmem:[%s0 + $0x150] sm:$0xff]
    %v64 = vld [vmem:[%s0 + $0x158] sm:$0xff]
    %v65 = vld [vmem:[%s0 + $0x160] sm:$0xff]
    %v66 = vld [vmem:[%s0 + $0x168] sm:$0xff]
    %v67 = vld [vmem:[%s0 + $0x170] sm:$0xff]
    %v68 = vld [vmem:[%s0 + $0x178] sm:$0xff]
    %v69 = vld [vmem:[%s0 + $0x180] sm:$0xff]
    %v70 = vld [vmem:[%s0 + $0x188] sm:$0xff]
    %v71 = vld [vmem:[%s0 + $0x190] sm:$0xff]
    %v72 = vld [vmem:[%s0 + $0x198] sm:$0xff]
    %v73 = vld [vmem:[%s0 + $0x1a0] sm:$0xff]
    %v74 = vld [vmem:[%s0 + $0x1a8] sm:$0xff]
    %v75 = vld [vmem:[%s0 + $0x1b0] sm:$0xff]
    %v76 = vld [vmem:[%s0 + $0x1b8] sm:$0xff]
    %v77 = vld [vmem:[%s0 + $0x1c0] sm:$0xff]
    %v78 = vld [vmem:[%s0 + $0x1c8] sm:$0xff]
    %v79 = vld [vmem:[%s0 + $0x1d0] sm:$0xff]
    %v80 = vld [vmem:[%s0 + $0x1d8] sm:$0xff]
    %v81 = vld [vmem:[%s0 + $0x1e0] sm:$0xff]
    %v82 = vld [vmem:[%s0 + $0x1e8] sm:$0xff]
    %v83 = vld [vmem:[%s0 + $0x1f0] sm:$0xff]
    %v84 = vld [vmem:[%s0 + $0x1f8] sm:$0xff]
    %vm85 = vcmask 261120
    %v86 = vsel %vm85, %v21, 0.0
    %87 = vadd.xlane.f32.xlu0 %v86
    %v88 = vpop.xlane.xlu0 %87
    %v89 = vsel %vm85, %v22, 0.0
    %90 = vadd.xlane.f32.xlu0 %v89
    %v91 = vpop.xlane.xlu0 %90
    %v92 = vsel %vm85, %v23, 0.0
    %93 = vadd.xlane.f32.xlu0 %v92
    %v94 = vpop.xlane.xlu0 %93
    %v95 = vsel %vm85, %v24, 0.0
    %96 = vadd.xlane.f32.xlu0 %v95
    %v97 = vpop.xlane.xlu0 %96
    %v98 = vsel %vm85, %v25, 0.0
    %99 = vadd.xlane.f32.xlu0 %v98
    %v100 = vpop.xlane.xlu0 %99
    %v101 = vsel %vm85, %v26, 0.0
    %102 = vadd.xlane.f32.xlu0 %v101
    %v103 = vpop.xlane.xlu0 %102
    %v104 = vsel %vm85, %v27, 0.0
    %105 = vadd.xlane.f32.xlu0 %v104
    %v106 = vpop.xlane.xlu0 %105
    %v107 = vsel %vm85, %v28, 0.0
    %108 = vadd.xlane.f32.xlu0 %v107
    %v109 = vpop.xlane.xlu0 %108
    %v110 = vsel %vm85, %v29, 0.0
    %111 = vadd.xlane.f32.xlu0 %v110
    %v112 = vpop.xlane.xlu0 %111
    %v113 = vsel %vm85, %v30, 0.0
    %114 = vadd.xlane.f32.xlu0 %v113
    %v115 = vpop.xlane.xlu0 %114
    %v116 = vsel %vm85, %v31, 0.0
    %117 = vadd.xlane.f32.xlu0 %v116
    %v118 = vpop.xlane.xlu0 %117
    %v119 = vsel %vm85, %v32, 0.0
    %120 = vadd.xlane.f32.xlu0 %v119
    %v121 = vpop.xlane.xlu0 %120
    %v122 = vsel %vm85, %v33, 0.0
    %123 = vadd.xlane.f32.xlu0 %v122
    %v124 = vpop.xlane.xlu0 %123
    %v125 = vsel %vm85, %v34, 0.0
    %126 = vadd.xlane.f32.xlu0 %v125
    %v127 = vpop.xlane.xlu0 %126
    %v128 = vsel %vm85, %v35, 0.0
    %129 = vadd.xlane.f32.xlu0 %v128
    %v130 = vpop.xlane.xlu0 %129
    %v131 = vsel %vm85, %v36, 0.0
    %132 = vadd.xlane.f32.xlu0 %v131
    %v133 = vpop.xlane.xlu0 %132
    %v134 = vsel %vm85, %v37, 0.0
    %135 = vadd.xlane.f32.xlu0 %v134
    %v136 = vpop.xlane.xlu0 %135
    %v137 = vsel %vm85, %v38, 0.0
    %138 = vadd.xlane.f32.xlu0 %v137
    %v139 = vpop.xlane.xlu0 %138
    %v140 = vsel %vm85, %v39, 0.0
    %141 = vadd.xlane.f32.xlu0 %v140
    %v142 = vpop.xlane.xlu0 %141
    %v143 = vsel %vm85, %v40, 0.0
    %144 = vadd.xlane.f32.xlu0 %v143
    %v145 = vpop.xlane.xlu0 %144
    %v146 = vsel %vm85, %v41, 0.0
    %147 = vadd.xlane.f32.xlu0 %v146
    %v148 = vpop.xlane.xlu0 %147
    %v149 = vsel %vm85, %v42, 0.0
    %150 = vadd.xlane.f32.xlu0 %v149
    %v151 = vpop.xlane.xlu0 %150
    %v152 = vsel %vm85, %v43, 0.0
    %153 = vadd.xlane.f32.xlu0 %v152
    %v154 = vpop.xlane.xlu0 %153
    %v155 = vsel %vm85, %v44, 0.0
    %156 = vadd.xlane.f32.xlu0 %v155
    %v157 = vpop.xlane.xlu0 %156
    %v158 = vsel %vm85, %v45, 0.0
    %159 = vadd.xlane.f32.xlu0 %v158
    %v160 = vpop.xlane.xlu0 %159
    %v161 = vsel %vm85, %v46, 0.0
    %162 = vadd.xlane.f32.xlu0 %v161
    %v163 = vpop.xlane.xlu0 %162
    %v164 = vsel %vm85, %v47, 0.0
    %165 = vadd.xlane.f32.xlu0 %v164
    %v166 = vpop.xlane.xlu0 %165
    %v167 = vsel %vm85, %v48, 0.0
    %168 = vadd.xlane.f32.xlu0 %v167
    %v169 = vpop.xlane.xlu0 %168
    %v170 = vsel %vm85, %v49, 0.0
    %171 = vadd.xlane.f32.xlu0 %v170
    %v172 = vpop.xlane.xlu0 %171
    %v173 = vsel %vm85, %v50, 0.0
    %174 = vadd.xlane.f32.xlu0 %v173
    %v175 = vpop.xlane.xlu0 %174
    %v176 = vsel %vm85, %v51, 0.0
    %177 = vadd.xlane.f32.xlu0 %v176
    %v178 = vpop.xlane.xlu0 %177
    %v179 = vsel %vm85, %v52, 0.0
    %180 = vadd.xlane.f32.xlu0 %v179
    %v181 = vpop.xlane.xlu0 %180
    %v182 = vsel %vm85, %v53, 0.0
    %183 = vadd.xlane.f32.xlu0 %v182
    %v184 = vpop.xlane.xlu0 %183
    %v185 = vsel %vm85, %v54, 0.0
    %186 = vadd.xlane.f32.xlu0 %v185
    %v187 = vpop.xlane.xlu0 %186
    %v188 = vsel %vm85, %v55, 0.0
    %189 = vadd.xlane.f32.xlu0 %v188
    %v190 = vpop.xlane.xlu0 %189
    %v191 = vsel %vm85, %v56, 0.0
    %192 = vadd.xlane.f32.xlu0 %v191
    %v193 = vpop.xlane.xlu0 %192
    %v194 = vsel %vm85, %v57, 0.0
    %195 = vadd.xlane.f32.xlu0 %v194
    %v196 = vpop.xlane.xlu0 %195
    %v197 = vsel %vm85, %v58, 0.0
    %198 = vadd.xlane.f32.xlu0 %v197
    %v199 = vpop.xlane.xlu0 %198
    %v200 = vsel %vm85, %v59, 0.0
    %201 = vadd.xlane.f32.xlu0 %v200
    %v202 = vpop.xlane.xlu0 %201
    %v203 = vsel %vm85, %v60, 0.0
    %204 = vadd.xlane.f32.xlu0 %v203
    %v205 = vpop.xlane.xlu0 %204
    %v206 = vsel %vm85, %v61, 0.0
    %207 = vadd.xlane.f32.xlu0 %v206
    %v208 = vpop.xlane.xlu0 %207
    %v209 = vsel %vm85, %v62, 0.0
    %210 = vadd.xlane.f32.xlu0 %v209
    %v211 = vpop.xlane.xlu0 %210
    %v212 = vsel %vm85, %v63, 0.0
    %213 = vadd.xlane.f32.xlu0 %v212
    %v214 = vpop.xlane.xlu0 %213
    %v215 = vsel %vm85, %v64, 0.0
    %216 = vadd.xlane.f32.xlu0 %v215
    %v217 = vpop.xlane.xlu0 %216
    %v218 = vsel %vm85, %v65, 0.0
    %219 = vadd.xlane.f32.xlu0 %v218
    %v220 = vpop.xlane.xlu0 %219
    %v221 = vsel %vm85, %v66, 0.0
    %222 = vadd.xlane.f32.xlu0 %v221
    %v223 = vpop.xlane.xlu0 %222
    %v224 = vsel %vm85, %v67, 0.0
    %225 = vadd.xlane.f32.xlu0 %v224
    %v226 = vpop.xlane.xlu0 %225
    %v227 = vsel %vm85, %v68, 0.0
    %228 = vadd.xlane.f32.xlu0 %v227
    %v229 = vpop.xlane.xlu0 %228
    %v230 = vsel %vm85, %v69, 0.0
    %231 = vadd.xlane.f32.xlu0 %v230
    %v232 = vpop.xlane.xlu0 %231
    %v233 = vsel %vm85, %v70, 0.0
    %234 = vadd.xlane.f32.xlu0 %v233
    %v235 = vpop.xlane.xlu0 %234
    %v236 = vsel %vm85, %v71, 0.0
    %237 = vadd.xlane.f32.xlu0 %v236
    %v238 = vpop.xlane.xlu0 %237
    %v239 = vsel %vm85, %v72, 0.0
    %240 = vadd.xlane.f32.xlu0 %v239
    %v241 = vpop.xlane.xlu0 %240
    %v242 = vsel %vm85, %v73, 0.0
    %243 = vadd.xlane.f32.xlu0 %v242
    %v244 = vpop.xlane.xlu0 %243
    %v245 = vsel %vm85, %v74, 0.0
    %246 = vadd.xlane.f32.xlu0 %v245
    %v247 = vpop.xlane.xlu0 %246
    %v248 = vsel %vm85, %v75, 0.0
    %249 = vadd.xlane.f32.xlu0 %v248
    %v250 = vpop.xlane.xlu0 %249
    %v251 = vsel %vm85, %v76, 0.0
    %252 = vadd.xlane.f32.xlu0 %v251
    %v253 = vpop.xlane.xlu0 %252
    %v254 = vsel %vm85, %v77, 0.0
    %255 = vadd.xlane.f32.xlu0 %v254
    %v256 = vpop.xlane.xlu0 %255
    %v257 = vsel %vm85, %v78, 0.0
    %258 = vadd.xlane.f32.xlu0 %v257
    %v259 = vpop.xlane.xlu0 %258
    %v260 = vsel %vm85, %v79, 0.0
    %261 = vadd.xlane.f32.xlu0 %v260
    %v262 = vpop.xlane.xlu0 %261
    %v263 = vsel %vm85, %v80, 0.0
    %264 = vadd.xlane.f32.xlu0 %v263
    %v265 = vpop.xlane.xlu0 %264
    %v266 = vsel %vm85, %v81, 0.0
    %267 = vadd.xlane.f32.xlu0 %v266
    %v268 = vpop.xlane.xlu0 %267
    %v269 = vsel %vm85, %v82, 0.0
    %270 = vadd.xlane.f32.xlu0 %v269
    %v271 = vpop.xlane.xlu0 %270
    %v272 = vsel %vm85, %v83, 0.0
    %273 = vadd.xlane.f32.xlu0 %v272
    %v274 = vpop.xlane.xlu0 %273
    %v275 = vsel %vm85, %v84, 0.0
    %276 = vadd.xlane.f32.xlu0 %v275
    %v277 = vpop.xlane.xlu0 %276
    %v278 = vrcp.pop 32.0
    %v279 = vmul.f32 32.0, %v278
    %v280 = vsub.f32 1.0, %v279
    %v281 = vmul.f32 %v278, %v280
    %v282 = vadd.f32 %v278, %v281
    %vm283 = vweird.f32 %v278
    %v284 = vsel %vm283, %v278, %v282
    %v285 = vmul.f32 %v88, %v284
    %v286 = vmul.f32 %v91, %v284
    %v287 = vmul.f32 %v94, %v284
    %v288 = vmul.f32 %v97, %v284
    %v289 = vmul.f32 %v100, %v284
    %v290 = vmul.f32 %v103, %v284
    %v291 = vmul.f32 %v106, %v284
    %v292 = vmul.f32 %v109, %v284
    %v293 = vmul.f32 %v112, %v284
    %v294 = vmul.f32 %v115, %v284
    %v295 = vmul.f32 %v118, %v284
    %v296 = vmul.f32 %v121, %v284
    %v297 = vmul.f32 %v124, %v284
    %v298 = vmul.f32 %v127, %v284
    %v299 = vmul.f32 %v130, %v284
    %v300 = vmul.f32 %v133, %v284
    %v301 = vmul.f32 %v136, %v284
    %v302 = vmul.f32 %v139, %v284
    %v303 = vmul.f32 %v142, %v284
    %v304 = vmul.f32 %v145, %v284
    %v305 = vmul.f32 %v148, %v284
    %v306 = vmul.f32 %v151, %v284
    %v307 = vmul.f32 %v154, %v284
    %v308 = vmul.f32 %v157, %v284
    %v309 = vmul.f32 %v160, %v284
    %v310 = vmul.f32 %v163, %v284
    %v311 = vmul.f32 %v166, %v284
    %v312 = vmul.f32 %v169, %v284
    %v313 = vmul.f32 %v172, %v284
    %v314 = vmul.f32 %v175, %v284
    %v315 = vmul.f32 %v178, %v284
    %v316 = vmul.f32 %v181, %v284
    %v317 = vmul.f32 %v184, %v284
    %v318 = vmul.f32 %v187, %v284
    %v319 = vmul.f32 %v190, %v284
    %v320 = vmul.f32 %v193, %v284
    %v321 = vmul.f32 %v196, %v284
    %v322 = vmul.f32 %v199, %v284
    %v323 = vmul.f32 %v202, %v284
    %v324 = vmul.f32 %v205, %v284
    %v325 = vmul.f32 %v208, %v284
    %v326 = vmul.f32 %v211, %v284
    %v327 = vmul.f32 %v214, %v284
    %v328 = vmul.f32 %v217, %v284
    %v329 = vmul.f32 %v220, %v284
    %v330 = vmul.f32 %v223, %v284
    %v331 = vmul.f32 %v226, %v284
    %v332 = vmul.f32 %v229, %v284
    %v333 = vmul.f32 %v232, %v284
    %v334 = vmul.f32 %v235, %v284
    %v335 = vmul.f32 %v238, %v284
    %v336 = vmul.f32 %v241, %v284
    %v337 = vmul.f32 %v244, %v284
    %v338 = vmul.f32 %v247, %v284
    %v339 = vmul.f32 %v250, %v284
    %v340 = vmul.f32 %v253, %v284
    %v341 = vmul.f32 %v256, %v284
    %v342 = vmul.f32 %v259, %v284
    %v343 = vmul.f32 %v262, %v284
    %v344 = vmul.f32 %v265, %v284
    %v345 = vmul.f32 %v268, %v284
    %v346 = vmul.f32 %v271, %v284
    %v347 = vmul.f32 %v274, %v284
    %v348 = vmul.f32 %v277, %v284
    %v349 = vsub.f32 %v21, %v285
    %v350 = vsub.f32 %v22, %v286
    %v351 = vsub.f32 %v23, %v287
    %v352 = vsub.f32 %v24, %v288
    %v353 = vsub.f32 %v25, %v289
    %v354 = vsub.f32 %v26, %v290
    %v355 = vsub.f32 %v27, %v291
    %v356 = vsub.f32 %v28, %v292
    %v357 = vsub.f32 %v29, %v293
    %v358 = vsub.f32 %v30, %v294
    %v359 = vsub.f32 %v31, %v295
    %v360 = vsub.f32 %v32, %v296
    %v361 = vsub.f32 %v33, %v297
    %v362 = vsub.f32 %v34, %v298
    %v363 = vsub.f32 %v35, %v299
    %v364 = vsub.f32 %v36, %v300
    %v365 = vsub.f32 %v37, %v301
    %v366 = vsub.f32 %v38, %v302
    %v367 = vsub.f32 %v39, %v303
    %v368 = vsub.f32 %v40, %v304
    %v369 = vsub.f32 %v41, %v305
    %v370 = vsub.f32 %v42, %v306
    %v371 = vsub.f32 %v43, %v307
    %v372 = vsub.f32 %v44, %v308
    %v373 = vsub.f32 %v45, %v309
    %v374 = vsub.f32 %v46, %v310
    %v375 = vsub.f32 %v47, %v311
    %v376 = vsub.f32 %v48, %v312
    %v377 = vsub.f32 %v49, %v313
    %v378 = vsub.f32 %v50, %v314
    %v379 = vsub.f32 %v51, %v315
    %v380 = vsub.f32 %v52, %v316
    %v381 = vsub.f32 %v53, %v317
    %v382 = vsub.f32 %v54, %v318
    %v383 = vsub.f32 %v55, %v319
    %v384 = vsub.f32 %v56, %v320
    %v385 = vsub.f32 %v57, %v321
    %v386 = vsub.f32 %v58, %v322
    %v387 = vsub.f32 %v59, %v323
    %v388 = vsub.f32 %v60, %v324
    %v389 = vsub.f32 %v61, %v325
    %v390 = vsub.f32 %v62, %v326
    %v391 = vsub.f32 %v63, %v327
    %v392 = vsub.f32 %v64, %v328
    %v393 = vsub.f32 %v65, %v329
    %v394 = vsub.f32 %v66, %v330
    %v395 = vsub.f32 %v67, %v331
    %v396 = vsub.f32 %v68, %v332
    %v397 = vsub.f32 %v69, %v333
    %v398 = vsub.f32 %v70, %v334
    %v399 = vsub.f32 %v71, %v335
    %v400 = vsub.f32 %v72, %v336
    %v401 = vsub.f32 %v73, %v337
    %v402 = vsub.f32 %v74, %v338
    %v403 = vsub.f32 %v75, %v339
    %v404 = vsub.f32 %v76, %v340
    %v405 = vsub.f32 %v77, %v341
    %v406 = vsub.f32 %v78, %v342
    %v407 = vsub.f32 %v79, %v343
    %v408 = vsub.f32 %v80, %v344
    %v409 = vsub.f32 %v81, %v345
    %v410 = vsub.f32 %v82, %v346
    %v411 = vsub.f32 %v83, %v347
    %v412 = vsub.f32 %v84, %v348
    %v413 = vmul.f32 %v349, %v349
    %v414 = vmul.f32 %v350, %v350
    %v415 = vmul.f32 %v351, %v351
    %v416 = vmul.f32 %v352, %v352
    %v417 = vmul.f32 %v353, %v353
    %v418 = vmul.f32 %v354, %v354
    %v419 = vmul.f32 %v355, %v355
    %v420 = vmul.f32 %v356, %v356
    %v421 = vmul.f32 %v357, %v357
    %v422 = vmul.f32 %v358, %v358
    %v423 = vmul.f32 %v359, %v359
    %v424 = vmul.f32 %v360, %v360
    %v425 = vmul.f32 %v361, %v361
    %v426 = vmul.f32 %v362, %v362
    %v427 = vmul.f32 %v363, %v363
    %v428 = vmul.f32 %v364, %v364
    %v429 = vmul.f32 %v365, %v365
    %v430 = vmul.f32 %v366, %v366
    %v431 = vmul.f32 %v367, %v367
    %v432 = vmul.f32 %v368, %v368
    %v433 = vmul.f32 %v369, %v369
    %v434 = vmul.f32 %v370, %v370
    %v435 = vmul.f32 %v371, %v371
    %v436 = vmul.f32 %v372, %v372
    %v437 = vmul.f32 %v373, %v373
    %v438 = vmul.f32 %v374, %v374
    %v439 = vmul.f32 %v375, %v375
    %v440 = vmul.f32 %v376, %v376
    %v441 = vmul.f32 %v377, %v377
    %v442 = vmul.f32 %v378, %v378
    %v443 = vmul.f32 %v379, %v379
    %v444 = vmul.f32 %v380, %v380
    %v445 = vmul.f32 %v381, %v381
    %v446 = vmul.f32 %v382, %v382
    %v447 = vmul.f32 %v383, %v383
    %v448 = vmul.f32 %v384, %v384
    %v449 = vmul.f32 %v385, %v385
    %v450 = vmul.f32 %v386, %v386
    %v451 = vmul.f32 %v387, %v387
    %v452 = vmul.f32 %v388, %v388
    %v453 = vmul.f32 %v389, %v389
    %v454 = vmul.f32 %v390, %v390
    %v455 = vmul.f32 %v391, %v391
    %v456 = vmul.f32 %v392, %v392
    %v457 = vmul.f32 %v393, %v393
    %v458 = vmul.f32 %v394, %v394
    %v459 = vmul.f32 %v395, %v395
    %v460 = vmul.f32 %v396, %v396
    %v461 = vmul.f32 %v397, %v397
    %v462 = vmul.f32 %v398, %v398
    %v463 = vmul.f32 %v399, %v399
    %v464 = vmul.f32 %v400, %v400
    %v465 = vmul.f32 %v401, %v401
    %v466 = vmul.f32 %v402, %v402
    %v467 = vmul.f32 %v403, %v403
    %v468 = vmul.f32 %v404, %v404
    %v469 = vmul.f32 %v405, %v405
    %v470 = vmul.f32 %v406, %v406
    %v471 = vmul.f32 %v407, %v407
    %v472 = vmul.f32 %v408, %v408
    %v473 = vmul.f32 %v409, %v409
    %v474 = vmul.f32 %v410, %v410
    %v475 = vmul.f32 %v411, %v411
    %v476 = vmul.f32 %v412, %v412
    %v477 = vsel %vm85, %v413, 0.0
    %478 = vadd.xlane.f32.xlu0 %v477
    %v479 = vpop.xlane.xlu0 %478
    %v480 = vsel %vm85, %v414, 0.0
    %481 = vadd.xlane.f32.xlu0 %v480
    %v482 = vpop.xlane.xlu0 %481
    %v483 = vsel %vm85, %v415, 0.0
    %484 = vadd.xlane.f32.xlu0 %v483
    %v485 = vpop.xlane.xlu0 %484
    %v486 = vsel %vm85, %v416, 0.0
    %487 = vadd.xlane.f32.xlu0 %v486
    %v488 = vpop.xlane.xlu0 %487
    %v489 = vsel %vm85, %v417, 0.0
    %490 = vadd.xlane.f32.xlu0 %v489
    %v491 = vpop.xlane.xlu0 %490
    %v492 = vsel %vm85, %v418, 0.0
    %493 = vadd.xlane.f32.xlu0 %v492
    %v494 = vpop.xlane.xlu0 %493
    %v495 = vsel %vm85, %v419, 0.0
    %496 = vadd.xlane.f32.xlu0 %v495
    %v497 = vpop.xlane.xlu0 %496
    %v498 = vsel %vm85, %v420, 0.0
    %499 = vadd.xlane.f32.xlu0 %v498
    %v500 = vpop.xlane.xlu0 %499
    %v501 = vsel %vm85, %v421, 0.0
    %502 = vadd.xlane.f32.xlu0 %v501
    %v503 = vpop.xlane.xlu0 %502
    %v504 = vsel %vm85, %v422, 0.0
    %505 = vadd.xlane.f32.xlu0 %v504
    %v506 = vpop.xlane.xlu0 %505
    %v507 = vsel %vm85, %v423, 0.0
    %508 = vadd.xlane.f32.xlu0 %v507
    %v509 = vpop.xlane.xlu0 %508
    %v510 = vsel %vm85, %v424, 0.0
    %511 = vadd.xlane.f32.xlu0 %v510
    %v512 = vpop.xlane.xlu0 %511
    %v513 = vsel %vm85, %v425, 0.0
    %514 = vadd.xlane.f32.xlu0 %v513
    %v515 = vpop.xlane.xlu0 %514
    %v516 = vsel %vm85, %v426, 0.0
    %517 = vadd.xlane.f32.xlu0 %v516
    %v518 = vpop.xlane.xlu0 %517
    %v519 = vsel %vm85, %v427, 0.0
    %520 = vadd.xlane.f32.xlu0 %v519
    %v521 = vpop.xlane.xlu0 %520
    %v522 = vsel %vm85, %v428, 0.0
    %523 = vadd.xlane.f32.xlu0 %v522
    %v524 = vpop.xlane.xlu0 %523
    %v525 = vsel %vm85, %v429, 0.0
    %526 = vadd.xlane.f32.xlu0 %v525
    %v527 = vpop.xlane.xlu0 %526
    %v528 = vsel %vm85, %v430, 0.0
    %529 = vadd.xlane.f32.xlu0 %v528
    %v530 = vpop.xlane.xlu0 %529
    %v531 = vsel %vm85, %v431, 0.0
    %532 = vadd.xlane.f32.xlu0 %v531
    %v533 = vpop.xlane.xlu0 %532
    %v534 = vsel %vm85, %v432, 0.0
    %535 = vadd.xlane.f32.xlu0 %v534
    %v536 = vpop.xlane.xlu0 %535
    %v537 = vsel %vm85, %v433, 0.0
    %538 = vadd.xlane.f32.xlu0 %v537
    %v539 = vpop.xlane.xlu0 %538
    %v540 = vsel %vm85, %v434, 0.0
    %541 = vadd.xlane.f32.xlu0 %v540
    %v542 = vpop.xlane.xlu0 %541
    %v543 = vsel %vm85, %v435, 0.0
    %544 = vadd.xlane.f32.xlu0 %v543
    %v545 = vpop.xlane.xlu0 %544
    %v546 = vsel %vm85, %v436, 0.0
    %547 = vadd.xlane.f32.xlu0 %v546
    %v548 = vpop.xlane.xlu0 %547
    %v549 = vsel %vm85, %v437, 0.0
    %550 = vadd.xlane.f32.xlu0 %v549
    %v551 = vpop.xlane.xlu0 %550
    %v552 = vsel %vm85, %v438, 0.0
    %553 = vadd.xlane.f32.xlu0 %v552
    %v554 = vpop.xlane.xlu0 %553
    %v555 = vsel %vm85, %v439, 0.0
    %556 = vadd.xlane.f32.xlu0 %v555
    %v557 = vpop.xlane.xlu0 %556
    %v558 = vsel %vm85, %v440, 0.0
    %559 = vadd.xlane.f32.xlu0 %v558
    %v560 = vpop.xlane.xlu0 %559
    %v561 = vsel %vm85, %v441, 0.0
    %562 = vadd.xlane.f32.xlu0 %v561
    %v563 = vpop.xlane.xlu0 %562
    %v564 = vsel %vm85, %v442, 0.0
    %565 = vadd.xlane.f32.xlu0 %v564
    %v566 = vpop.xlane.xlu0 %565
    %v567 = vsel %vm85, %v443, 0.0
    %568 = vadd.xlane.f32.xlu0 %v567
    %v569 = vpop.xlane.xlu0 %568
    %v570 = vsel %vm85, %v444, 0.0
    %571 = vadd.xlane.f32.xlu0 %v570
    %v572 = vpop.xlane.xlu0 %571
    %v573 = vsel %vm85, %v445, 0.0
    %574 = vadd.xlane.f32.xlu0 %v573
    %v575 = vpop.xlane.xlu0 %574
    %v576 = vsel %vm85, %v446, 0.0
    %577 = vadd.xlane.f32.xlu0 %v576
    %v578 = vpop.xlane.xlu0 %577
    %v579 = vsel %vm85, %v447, 0.0
    %580 = vadd.xlane.f32.xlu0 %v579
    %v581 = vpop.xlane.xlu0 %580
    %v582 = vsel %vm85, %v448, 0.0
    %583 = vadd.xlane.f32.xlu0 %v582
    %v584 = vpop.xlane.xlu0 %583
    %v585 = vsel %vm85, %v449, 0.0
    %586 = vadd.xlane.f32.xlu0 %v585
    %v587 = vpop.xlane.xlu0 %586
    %v588 = vsel %vm85, %v450, 0.0
    %589 = vadd.xlane.f32.xlu0 %v588
    %v590 = vpop.xlane.xlu0 %589
    %v591 = vsel %vm85, %v451, 0.0
    %592 = vadd.xlane.f32.xlu0 %v591
    %v593 = vpop.xlane.xlu0 %592
    %v594 = vsel %vm85, %v452, 0.0
    %595 = vadd.xlane.f32.xlu0 %v594
    %v596 = vpop.xlane.xlu0 %595
    %v597 = vsel %vm85, %v453, 0.0
    %598 = vadd.xlane.f32.xlu0 %v597
    %v599 = vpop.xlane.xlu0 %598
    %v600 = vsel %vm85, %v454, 0.0
    %601 = vadd.xlane.f32.xlu0 %v600
    %v602 = vpop.xlane.xlu0 %601
    %v603 = vsel %vm85, %v455, 0.0
    %604 = vadd.xlane.f32.xlu0 %v603
    %v605 = vpop.xlane.xlu0 %604
    %v606 = vsel %vm85, %v456, 0.0
    %607 = vadd.xlane.f32.xlu0 %v606
    %v608 = vpop.xlane.xlu0 %607
    %v609 = vsel %vm85, %v457, 0.0
    %610 = vadd.xlane.f32.xlu0 %v609
    %v611 = vpop.xlane.xlu0 %610
    %v612 = vsel %vm85, %v458, 0.0
    %613 = vadd.xlane.f32.xlu0 %v612
    %v614 = vpop.xlane.xlu0 %613
    %v615 = vsel %vm85, %v459, 0.0
    %616 = vadd.xlane.f32.xlu0 %v615
    %v617 = vpop.xlane.xlu0 %616
    %v618 = vsel %vm85, %v460, 0.0
    %619 = vadd.xlane.f32.xlu0 %v618
    %v620 = vpop.xlane.xlu0 %619
    %v621 = vsel %vm85, %v461, 0.0
    %622 = vadd.xlane.f32.xlu0 %v621
    %v623 = vpop.xlane.xlu0 %622
    %v624 = vsel %vm85, %v462, 0.0
    %625 = vadd.xlane.f32.xlu0 %v624
    %v626 = vpop.xlane.xlu0 %625
    %v627 = vsel %vm85, %v463, 0.0
    %628 = vadd.xlane.f32.xlu0 %v627
    %v629 = vpop.xlane.xlu0 %628
    %v630 = vsel %vm85, %v464, 0.0
    %631 = vadd.xlane.f32.xlu0 %v630
    %v632 = vpop.xlane.xlu0 %631
    %v633 = vsel %vm85, %v465, 0.0
    %634 = vadd.xlane.f32.xlu0 %v633
    %v635 = vpop.xlane.xlu0 %634
    %v636 = vsel %vm85, %v466, 0.0
    %637 = vadd.xlane.f32.xlu0 %v636
    %v638 = vpop.xlane.xlu0 %637
    %v639 = vsel %vm85, %v467, 0.0
    %640 = vadd.xlane.f32.xlu0 %v639
    %v641 = vpop.xlane.xlu0 %640
    %v642 = vsel %vm85, %v468, 0.0
    %643 = vadd.xlane.f32.xlu0 %v642
    %v644 = vpop.xlane.xlu0 %643
    %v645 = vsel %vm85, %v469, 0.0
    %646 = vadd.xlane.f32.xlu0 %v645
    %v647 = vpop.xlane.xlu0 %646
    %v648 = vsel %vm85, %v470, 0.0
    %649 = vadd.xlane.f32.xlu0 %v648
    %v650 = vpop.xlane.xlu0 %649
    %v651 = vsel %vm85, %v471, 0.0
    %652 = vadd.xlane.f32.xlu0 %v651
    %v653 = vpop.xlane.xlu0 %652
    %v654 = vsel %vm85, %v472, 0.0
    %655 = vadd.xlane.f32.xlu0 %v654
    %v656 = vpop.xlane.xlu0 %655
    %v657 = vsel %vm85, %v473, 0.0
    %658 = vadd.xlane.f32.xlu0 %v657
    %v659 = vpop.xlane.xlu0 %658
    %v660 = vsel %vm85, %v474, 0.0
    %661 = vadd.xlane.f32.xlu0 %v660
    %v662 = vpop.xlane.xlu0 %661
    %v663 = vsel %vm85, %v475, 0.0
    %664 = vadd.xlane.f32.xlu0 %v663
    %v665 = vpop.xlane.xlu0 %664
    %v666 = vsel %vm85, %v476, 0.0
    %667 = vadd.xlane.f32.xlu0 %v666
    %v668 = vpop.xlane.xlu0 %667
    %v669 = vmul.f32 %v479, %v284
    %v670 = vmul.f32 %v482, %v284
    %v671 = vmul.f32 %v485, %v284
    %v672 = vmul.f32 %v488, %v284
    %v673 = vmul.f32 %v491, %v284
    %v674 = vmul.f32 %v494, %v284
    %v675 = vmul.f32 %v497, %v284
    %v676 = vmul.f32 %v500, %v284
    %v677 = vmul.f32 %v503, %v284
    %v678 = vmul.f32 %v506, %v284
    %v679 = vmul.f32 %v509, %v284
    %v680 = vmul.f32 %v512, %v284
    %v681 = vmul.f32 %v515, %v284
    %v682 = vmul.f32 %v518, %v284
    %v683 = vmul.f32 %v521, %v284
    %v684 = vmul.f32 %v524, %v284
    %v685 = vmul.f32 %v527, %v284
    %v686 = vmul.f32 %v530, %v284
    %v687 = vmul.f32 %v533, %v284
    %v688 = vmul.f32 %v536, %v284
    %v689 = vmul.f32 %v539, %v284
    %v690 = vmul.f32 %v542, %v284
    %v691 = vmul.f32 %v545, %v284
    %v692 = vmul.f32 %v548, %v284
    %v693 = vmul.f32 %v551, %v284
    %v694 = vmul.f32 %v554, %v284
    %v695 = vmul.f32 %v557, %v284
    %v696 = vmul.f32 %v560, %v284
    %v697 = vmul.f32 %v563, %v284
    %v698 = vmul.f32 %v566, %v284
    %v699 = vmul.f32 %v569, %v284
    %v700 = vmul.f32 %v572, %v284
    %v701 = vmul.f32 %v575, %v284
    %v702 = vmul.f32 %v578, %v284
    %v703 = vmul.f32 %v581, %v284
    %v704 = vmul.f32 %v584, %v284
    %v705 = vmul.f32 %v587, %v284
    %v706 = vmul.f32 %v590, %v284
    %v707 = vmul.f32 %v593, %v284
    %v708 = vmul.f32 %v596, %v284
    %v709 = vmul.f32 %v599, %v284
    %v710 = vmul.f32 %v602, %v284
    %v711 = vmul.f32 %v605, %v284
    %v712 = vmul.f32 %v608, %v284
    %v713 = vmul.f32 %v611, %v284
    %v714 = vmul.f32 %v614, %v284
    %v715 = vmul.f32 %v617, %v284
    %v716 = vmul.f32 %v620, %v284
    %v717 = vmul.f32 %v623, %v284
    %v718 = vmul.f32 %v626, %v284
    %v719 = vmul.f32 %v629, %v284
    %v720 = vmul.f32 %v632, %v284
    %v721 = vmul.f32 %v635, %v284
    %v722 = vmul.f32 %v638, %v284
    %v723 = vmul.f32 %v641, %v284
    %v724 = vmul.f32 %v644, %v284
    %v725 = vmul.f32 %v647, %v284
    %v726 = vmul.f32 %v650, %v284
    %v727 = vmul.f32 %v653, %v284
    %v728 = vmul.f32 %v656, %v284
    %v729 = vmul.f32 %v659, %v284
    %v730 = vmul.f32 %v662, %v284
    %v731 = vmul.f32 %v665, %v284
    %v732 = vmul.f32 %v668, %v284
    %v733 = vadd.f32 %v669, 1e-05
    %v734 = vadd.f32 %v670, 1e-05
    %v735 = vadd.f32 %v671, 1e-05
    %v736 = vadd.f32 %v672, 1e-05
    %v737 = vadd.f32 %v673, 1e-05
    %v738 = vadd.f32 %v674, 1e-05
    %v739 = vadd.f32 %v675, 1e-05
    %v740 = vadd.f32 %v676, 1e-05
    %v741 = vadd.f32 %v677, 1e-05
    %v742 = vadd.f32 %v678, 1e-05
    %v743 = vadd.f32 %v679, 1e-05
    %v744 = vadd.f32 %v680, 1e-05
    %v745 = vadd.f32 %v681, 1e-05
    %v746 = vadd.f32 %v682, 1e-05
    %v747 = vadd.f32 %v683, 1e-05
    %v748 = vadd.f32 %v684, 1e-05
    %v749 = vadd.f32 %v685, 1e-05
    %v750 = vadd.f32 %v686, 1e-05
    %v751 = vadd.f32 %v687, 1e-05
    %v752 = vadd.f32 %v688, 1e-05
    %v753 = vadd.f32 %v689, 1e-05
    %v754 = vadd.f32 %v690, 1e-05
    %v755 = vadd.f32 %v691, 1e-05
    %v756 = vadd.f32 %v692, 1e-05
    %v757 = vadd.f32 %v693, 1e-05
    %v758 = vadd.f32 %v694, 1e-05
    %v759 = vadd.f32 %v695, 1e-05
    %v760 = vadd.f32 %v696, 1e-05
    %v761 = vadd.f32 %v697, 1e-05
    %v762 = vadd.f32 %v698, 1e-05
    %v763 = vadd.f32 %v699, 1e-05
    %v764 = vadd.f32 %v700, 1e-05
    %v765 = vadd.f32 %v701, 1e-05
    %v766 = vadd.f32 %v702, 1e-05
    %v767 = vadd.f32 %v703, 1e-05
    %v768 = vadd.f32 %v704, 1e-05
    %v769 = vadd.f32 %v705, 1e-05
    %v770 = vadd.f32 %v706, 1e-05
    %v771 = vadd.f32 %v707, 1e-05
    %v772 = vadd.f32 %v708, 1e-05
    %v773 = vadd.f32 %v709, 1e-05
    %v774 = vadd.f32 %v710, 1e-05
    %v775 = vadd.f32 %v711, 1e-05
    %v776 = vadd.f32 %v712, 1e-05
    %v777 = vadd.f32 %v713, 1e-05
    %v778 = vadd.f32 %v714, 1e-05
    %v779 = vadd.f32 %v715, 1e-05
    %v780 = vadd.f32 %v716, 1e-05
    %v781 = vadd.f32 %v717, 1e-05
    %v782 = vadd.f32 %v718, 1e-05
    %v783 = vadd.f32 %v719, 1e-05
    %v784 = vadd.f32 %v720, 1e-05
    %v785 = vadd.f32 %v721, 1e-05
    %v786 = vadd.f32 %v722, 1e-05
    %v787 = vadd.f32 %v723, 1e-05
    %v788 = vadd.f32 %v724, 1e-05
    %v789 = vadd.f32 %v725, 1e-05
    %v790 = vadd.f32 %v726, 1e-05
    %v791 = vadd.f32 %v727, 1e-05
    %v792 = vadd.f32 %v728, 1e-05
    %v793 = vadd.f32 %v729, 1e-05
    %v794 = vadd.f32 %v730, 1e-05
    %v795 = vadd.f32 %v731, 1e-05
    %v796 = vadd.f32 %v732, 1e-05
    %v797 = vrsqrt.pop %v733
    %v798 = vmul.f32 %v797, %v733
    %v799 = vmul.f32 %v798, %v797
    %v800 = vmul.f32 0.5, %v799
    %v801 = vsub.f32 1.5, %v800
    %v802 = vmul.f32 %v797, %v801
    %vm803 = vweird.f32 %v733
    %vm804 = vweird.f32 %v797
    %vm805 = vmor %vm803, %vm804
    %v806 = vsel %vm805, %v797, %v802
    %v807 = vrsqrt.pop %v734
    %v808 = vmul.f32 %v807, %v734
    %v809 = vmul.f32 %v808, %v807
    %v810 = vmul.f32 0.5, %v809
    %v811 = vsub.f32 1.5, %v810
    %v812 = vmul.f32 %v807, %v811
    %vm813 = vweird.f32 %v734
    %vm814 = vweird.f32 %v807
    %vm815 = vmor %vm813, %vm814
    %v816 = vsel %vm815, %v807, %v812
    %v817 = vrsqrt.pop %v735
    %v818 = vmul.f32 %v817, %v735
    %v819 = vmul.f32 %v818, %v817
    %v820 = vmul.f32 0.5, %v819
    %v821 = vsub.f32 1.5, %v820
    %v822 = vmul.f32 %v817, %v821
    %vm823 = vweird.f32 %v735
    %vm824 = vweird.f32 %v817
    %vm825 = vmor %vm823, %vm824
    %v826 = vsel %vm825, %v817, %v822
    %v827 = vrsqrt.pop %v736
    %v828 = vmul.f32 %v827, %v736
    %v829 = vmul.f32 %v828, %v827
    %v830 = vmul.f32 0.5, %v829
    %v831 = vsub.f32 1.5, %v830
    %v832 = vmul.f32 %v827, %v831
    %vm833 = vweird.f32 %v736
    %vm834 = vweird.f32 %v827
    %vm835 = vmor %vm833, %vm834
    %v836 = vsel %vm835, %v827, %v832
    %v837 = vrsqrt.pop %v737
    %v838 = vmul.f32 %v837, %v737
    %v839 = vmul.f32 %v838, %v837
    %v840 = vmul.f32 0.5, %v839
    %v841 = vsub.f32 1.5, %v840
    %v842 = vmul.f32 %v837, %v841
    %vm843 = vweird.f32 %v737
    %vm844 = vweird.f32 %v837
    %vm845 = vmor %vm843, %vm844
    %v846 = vsel %vm845, %v837, %v842
    %v847 = vrsqrt.pop %v738
    %v848 = vmul.f32 %v847, %v738
    %v849 = vmul.f32 %v848, %v847
    %v850 = vmul.f32 0.5, %v849
    %v851 = vsub.f32 1.5, %v850
    %v852 = vmul.f32 %v847, %v851
    %vm853 = vweird.f32 %v738
    %vm854 = vweird.f32 %v847
    %vm855 = vmor %vm853, %vm854
    %v856 = vsel %vm855, %v847, %v852
    %v857 = vrsqrt.pop %v739
    %v858 = vmul.f32 %v857, %v739
    %v859 = vmul.f32 %v858, %v857
    %v860 = vmul.f32 0.5, %v859
    %v861 = vsub.f32 1.5, %v860
    %v862 = vmul.f32 %v857, %v861
    %vm863 = vweird.f32 %v739
    %vm864 = vweird.f32 %v857
    %vm865 = vmor %vm863, %vm864
    %v866 = vsel %vm865, %v857, %v862
    %v867 = vrsqrt.pop %v740
    %v868 = vmul.f32 %v867, %v740
    %v869 = vmul.f32 %v868, %v867
    %v870 = vmul.f32 0.5, %v869
    %v871 = vsub.f32 1.5, %v870
    %v872 = vmul.f32 %v867, %v871
    %vm873 = vweird.f32 %v740
    %vm874 = vweird.f32 %v867
    %vm875 = vmor %vm873, %vm874
    %v876 = vsel %vm875, %v867, %v872
    %v877 = vrsqrt.pop %v741
    %v878 = vmul.f32 %v877, %v741
    %v879 = vmul.f32 %v878, %v877
    %v880 = vmul.f32 0.5, %v879
    %v881 = vsub.f32 1.5, %v880
    %v882 = vmul.f32 %v877, %v881
    %vm883 = vweird.f32 %v741
    %vm884 = vweird.f32 %v877
    %vm885 = vmor %vm883, %vm884
    %v886 = vsel %vm885, %v877, %v882
    %v887 = vrsqrt.pop %v742
    %v888 = vmul.f32 %v887, %v742
    %v889 = vmul.f32 %v888, %v887
    %v890 = vmul.f32 0.5, %v889
    %v891 = vsub.f32 1.5, %v890
    %v892 = vmul.f32 %v887, %v891
    %vm893 = vweird.f32 %v742
    %vm894 = vweird.f32 %v887
    %vm895 = vmor %vm893, %vm894
    %v896 = vsel %vm895, %v887, %v892
    %v897 = vrsqrt.pop %v743
    %v898 = vmul.f32 %v897, %v743
    %v899 = vmul.f32 %v898, %v897
    %v900 = vmul.f32 0.5, %v899
    %v901 = vsub.f32 1.5, %v900
    %v902 = vmul.f32 %v897, %v901
    %vm903 = vweird.f32 %v743
    %vm904 = vweird.f32 %v897
    %vm905 = vmor %vm903, %vm904
    %v906 = vsel %vm905, %v897, %v902
    %v907 = vrsqrt.pop %v744
    %v908 = vmul.f32 %v907, %v744
    %v909 = vmul.f32 %v908, %v907
    %v910 = vmul.f32 0.5, %v909
    %v911 = vsub.f32 1.5, %v910
    %v912 = vmul.f32 %v907, %v911
    %vm913 = vweird.f32 %v744
    %vm914 = vweird.f32 %v907
    %vm915 = vmor %vm913, %vm914
    %v916 = vsel %vm915, %v907, %v912
    %v917 = vrsqrt.pop %v745
    %v918 = vmul.f32 %v917, %v745
    %v919 = vmul.f32 %v918, %v917
    %v920 = vmul.f32 0.5, %v919
    %v921 = vsub.f32 1.5, %v920
    %v922 = vmul.f32 %v917, %v921
    %vm923 = vweird.f32 %v745
    %vm924 = vweird.f32 %v917
    %vm925 = vmor %vm923, %vm924
    %v926 = vsel %vm925, %v917, %v922
    %v927 = vrsqrt.pop %v746
    %v928 = vmul.f32 %v927, %v746
    %v929 = vmul.f32 %v928, %v927
    %v930 = vmul.f32 0.5, %v929
    %v931 = vsub.f32 1.5, %v930
    %v932 = vmul.f32 %v927, %v931
    %vm933 = vweird.f32 %v746
    %vm934 = vweird.f32 %v927
    %vm935 = vmor %vm933, %vm934
    %v936 = vsel %vm935, %v927, %v932
    %v937 = vrsqrt.pop %v747
    %v938 = vmul.f32 %v937, %v747
    %v939 = vmul.f32 %v938, %v937
    %v940 = vmul.f32 0.5, %v939
    %v941 = vsub.f32 1.5, %v940
    %v942 = vmul.f32 %v937, %v941
    %vm943 = vweird.f32 %v747
    %vm944 = vweird.f32 %v937
    %vm945 = vmor %vm943, %vm944
    %v946 = vsel %vm945, %v937, %v942
    %v947 = vrsqrt.pop %v748
    %v948 = vmul.f32 %v947, %v748
    %v949 = vmul.f32 %v948, %v947
    %v950 = vmul.f32 0.5, %v949
    %v951 = vsub.f32 1.5, %v950
    %v952 = vmul.f32 %v947, %v951
    %vm953 = vweird.f32 %v748
    %vm954 = vweird.f32 %v947
    %vm955 = vmor %vm953, %vm954
    %v956 = vsel %vm955, %v947, %v952
    %v957 = vrsqrt.pop %v749
    %v958 = vmul.f32 %v957, %v749
    %v959 = vmul.f32 %v958, %v957
    %v960 = vmul.f32 0.5, %v959
    %v961 = vsub.f32 1.5, %v960
    %v962 = vmul.f32 %v957, %v961
    %vm963 = vweird.f32 %v749
    %vm964 = vweird.f32 %v957
    %vm965 = vmor %vm963, %vm964
    %v966 = vsel %vm965, %v957, %v962
    %v967 = vrsqrt.pop %v750
    %v968 = vmul.f32 %v967, %v750
    %v969 = vmul.f32 %v968, %v967
    %v970 = vmul.f32 0.5, %v969
    %v971 = vsub.f32 1.5, %v970
    %v972 = vmul.f32 %v967, %v971
    %vm973 = vweird.f32 %v750
    %vm974 = vweird.f32 %v967
    %vm975 = vmor %vm973, %vm974
    %v976 = vsel %vm975, %v967, %v972
    %v977 = vrsqrt.pop %v751
    %v978 = vmul.f32 %v977, %v751
    %v979 = vmul.f32 %v978, %v977
    %v980 = vmul.f32 0.5, %v979
    %v981 = vsub.f32 1.5, %v980
    %v982 = vmul.f32 %v977, %v981
    %vm983 = vweird.f32 %v751
    %vm984 = vweird.f32 %v977
    %vm985 = vmor %vm983, %vm984
    %v986 = vsel %vm985, %v977, %v982
    %v987 = vrsqrt.pop %v752
    %v988 = vmul.f32 %v987, %v752
    %v989 = vmul.f32 %v988, %v987
    %v990 = vmul.f32 0.5, %v989
    %v991 = vsub.f32 1.5, %v990
    %v992 = vmul.f32 %v987, %v991
    %vm993 = vweird.f32 %v752
    %vm994 = vweird.f32 %v987
    %vm995 = vmor %vm993, %vm994
    %v996 = vsel %vm995, %v987, %v992
    %v997 = vrsqrt.pop %v753
    %v998 = vmul.f32 %v997, %v753
    %v999 = vmul.f32 %v998, %v997
    %v1000 = vmul.f32 0.5, %v999
    %v1001 = vsub.f32 1.5, %v1000
    %v1002 = vmul.f32 %v997, %v1001
    %vm1003 = vweird.f32 %v753
    %vm1004 = vweird.f32 %v997
    %vm1005 = vmor %vm1003, %vm1004
    %v1006 = vsel %vm1005, %v997, %v1002
    %v1007 = vrsqrt.pop %v754
    %v1008 = vmul.f32 %v1007, %v754
    %v1009 = vmul.f32 %v1008, %v1007
    %v1010 = vmul.f32 0.5, %v1009
    %v1011 = vsub.f32 1.5, %v1010
    %v1012 = vmul.f32 %v1007, %v1011
    %vm1013 = vweird.f32 %v754
    %vm1014 = vweird.f32 %v1007
    %vm1015 = vmor %vm1013, %vm1014
    %v1016 = vsel %vm1015, %v1007, %v1012
    %v1017 = vrsqrt.pop %v755
    %v1018 = vmul.f32 %v1017, %v755
    %v1019 = vmul.f32 %v1018, %v1017
    %v1020 = vmul.f32 0.5, %v1019
    %v1021 = vsub.f32 1.5, %v1020
    %v1022 = vmul.f32 %v1017, %v1021
    %vm1023 = vweird.f32 %v755
    %vm1024 = vweird.f32 %v1017
    %vm1025 = vmor %vm1023, %vm1024
    %v1026 = vsel %vm1025, %v1017, %v1022
    %v1027 = vrsqrt.pop %v756
    %v1028 = vmul.f32 %v1027, %v756
    %v1029 = vmul.f32 %v1028, %v1027
    %v1030 = vmul.f32 0.5, %v1029
    %v1031 = vsub.f32 1.5, %v1030
    %v1032 = vmul.f32 %v1027, %v1031
    %vm1033 = vweird.f32 %v756
    %vm1034 = vweird.f32 %v1027
    %vm1035 = vmor %vm1033, %vm1034
    %v1036 = vsel %vm1035, %v1027, %v1032
    %v1037 = vrsqrt.pop %v757
    %v1038 = vmul.f32 %v1037, %v757
    %v1039 = vmul.f32 %v1038, %v1037
    %v1040 = vmul.f32 0.5, %v1039
    %v1041 = vsub.f32 1.5, %v1040
    %v1042 = vmul.f32 %v1037, %v1041
    %vm1043 = vweird.f32 %v757
    %vm1044 = vweird.f32 %v1037
    %vm1045 = vmor %vm1043, %vm1044
    %v1046 = vsel %vm1045, %v1037, %v1042
    %v1047 = vrsqrt.pop %v758
    %v1048 = vmul.f32 %v1047, %v758
    %v1049 = vmul.f32 %v1048, %v1047
    %v1050 = vmul.f32 0.5, %v1049
    %v1051 = vsub.f32 1.5, %v1050
    %v1052 = vmul.f32 %v1047, %v1051
    %vm1053 = vweird.f32 %v758
    %vm1054 = vweird.f32 %v1047
    %vm1055 = vmor %vm1053, %vm1054
    %v1056 = vsel %vm1055, %v1047, %v1052
    %v1057 = vrsqrt.pop %v759
    %v1058 = vmul.f32 %v1057, %v759
    %v1059 = vmul.f32 %v1058, %v1057
    %v1060 = vmul.f32 0.5, %v1059
    %v1061 = vsub.f32 1.5, %v1060
    %v1062 = vmul.f32 %v1057, %v1061
    %vm1063 = vweird.f32 %v759
    %vm1064 = vweird.f32 %v1057
    %vm1065 = vmor %vm1063, %vm1064
    %v1066 = vsel %vm1065, %v1057, %v1062
    %v1067 = vrsqrt.pop %v760
    %v1068 = vmul.f32 %v1067, %v760
    %v1069 = vmul.f32 %v1068, %v1067
    %v1070 = vmul.f32 0.5, %v1069
    %v1071 = vsub.f32 1.5, %v1070
    %v1072 = vmul.f32 %v1067, %v1071
    %vm1073 = vweird.f32 %v760
    %vm1074 = vweird.f32 %v1067
    %vm1075 = vmor %vm1073, %vm1074
    %v1076 = vsel %vm1075, %v1067, %v1072
    %v1077 = vrsqrt.pop %v761
    %v1078 = vmul.f32 %v1077, %v761
    %v1079 = vmul.f32 %v1078, %v1077
    %v1080 = vmul.f32 0.5, %v1079
    %v1081 = vsub.f32 1.5, %v1080
    %v1082 = vmul.f32 %v1077, %v1081
    %vm1083 = vweird.f32 %v761
    %vm1084 = vweird.f32 %v1077
    %vm1085 = vmor %vm1083, %vm1084
    %v1086 = vsel %vm1085, %v1077, %v1082
    %v1087 = vrsqrt.pop %v762
    %v1088 = vmul.f32 %v1087, %v762
    %v1089 = vmul.f32 %v1088, %v1087
    %v1090 = vmul.f32 0.5, %v1089
    %v1091 = vsub.f32 1.5, %v1090
    %v1092 = vmul.f32 %v1087, %v1091
    %vm1093 = vweird.f32 %v762
    %vm1094 = vweird.f32 %v1087
    %vm1095 = vmor %vm1093, %vm1094
    %v1096 = vsel %vm1095, %v1087, %v1092
    %v1097 = vrsqrt.pop %v763
    %v1098 = vmul.f32 %v1097, %v763
    %v1099 = vmul.f32 %v1098, %v1097
    %v1100 = vmul.f32 0.5, %v1099
    %v1101 = vsub.f32 1.5, %v1100
    %v1102 = vmul.f32 %v1097, %v1101
    %vm1103 = vweird.f32 %v763
    %vm1104 = vweird.f32 %v1097
    %vm1105 = vmor %vm1103, %vm1104
    %v1106 = vsel %vm1105, %v1097, %v1102
    %v1107 = vrsqrt.pop %v764
    %v1108 = vmul.f32 %v1107, %v764
    %v1109 = vmul.f32 %v1108, %v1107
    %v1110 = vmul.f32 0.5, %v1109
    %v1111 = vsub.f32 1.5, %v1110
    %v1112 = vmul.f32 %v1107, %v1111
    %vm1113 = vweird.f32 %v764
    %vm1114 = vweird.f32 %v1107
    %vm1115 = vmor %vm1113, %vm1114
    %v1116 = vsel %vm1115, %v1107, %v1112
    %v1117 = vrsqrt.pop %v765
    %v1118 = vmul.f32 %v1117, %v765
    %v1119 = vmul.f32 %v1118, %v1117
    %v1120 = vmul.f32 0.5, %v1119
    %v1121 = vsub.f32 1.5, %v1120
    %v1122 = vmul.f32 %v1117, %v1121
    %vm1123 = vweird.f32 %v765
    %vm1124 = vweird.f32 %v1117
    %vm1125 = vmor %vm1123, %vm1124
    %v1126 = vsel %vm1125, %v1117, %v1122
    %v1127 = vrsqrt.pop %v766
    %v1128 = vmul.f32 %v1127, %v766
    %v1129 = vmul.f32 %v1128, %v1127
    %v1130 = vmul.f32 0.5, %v1129
    %v1131 = vsub.f32 1.5, %v1130
    %v1132 = vmul.f32 %v1127, %v1131
    %vm1133 = vweird.f32 %v766
    %vm1134 = vweird.f32 %v1127
    %vm1135 = vmor %vm1133, %vm1134
    %v1136 = vsel %vm1135, %v1127, %v1132
    %v1137 = vrsqrt.pop %v767
    %v1138 = vmul.f32 %v1137, %v767
    %v1139 = vmul.f32 %v1138, %v1137
    %v1140 = vmul.f32 0.5, %v1139
    %v1141 = vsub.f32 1.5, %v1140
    %v1142 = vmul.f32 %v1137, %v1141
    %vm1143 = vweird.f32 %v767
    %vm1144 = vweird.f32 %v1137
    %vm1145 = vmor %vm1143, %vm1144
    %v1146 = vsel %vm1145, %v1137, %v1142
    %v1147 = vrsqrt.pop %v768
    %v1148 = vmul.f32 %v1147, %v768
    %v1149 = vmul.f32 %v1148, %v1147
    %v1150 = vmul.f32 0.5, %v1149
    %v1151 = vsub.f32 1.5, %v1150
    %v1152 = vmul.f32 %v1147, %v1151
    %vm1153 = vweird.f32 %v768
    %vm1154 = vweird.f32 %v1147
    %vm1155 = vmor %vm1153, %vm1154
    %v1156 = vsel %vm1155, %v1147, %v1152
    %v1157 = vrsqrt.pop %v769
    %v1158 = vmul.f32 %v1157, %v769
    %v1159 = vmul.f32 %v1158, %v1157
    %v1160 = vmul.f32 0.5, %v1159
    %v1161 = vsub.f32 1.5, %v1160
    %v1162 = vmul.f32 %v1157, %v1161
    %vm1163 = vweird.f32 %v769
    %vm1164 = vweird.f32 %v1157
    %vm1165 = vmor %vm1163, %vm1164
    %v1166 = vsel %vm1165, %v1157, %v1162
    %v1167 = vrsqrt.pop %v770
    %v1168 = vmul.f32 %v1167, %v770
    %v1169 = vmul.f32 %v1168, %v1167
    %v1170 = vmul.f32 0.5, %v1169
    %v1171 = vsub.f32 1.5, %v1170
    %v1172 = vmul.f32 %v1167, %v1171
    %vm1173 = vweird.f32 %v770
    %vm1174 = vweird.f32 %v1167
    %vm1175 = vmor %vm1173, %vm1174
    %v1176 = vsel %vm1175, %v1167, %v1172
    %v1177 = vrsqrt.pop %v771
    %v1178 = vmul.f32 %v1177, %v771
    %v1179 = vmul.f32 %v1178, %v1177
    %v1180 = vmul.f32 0.5, %v1179
    %v1181 = vsub.f32 1.5, %v1180
    %v1182 = vmul.f32 %v1177, %v1181
    %vm1183 = vweird.f32 %v771
    %vm1184 = vweird.f32 %v1177
    %vm1185 = vmor %vm1183, %vm1184
    %v1186 = vsel %vm1185, %v1177, %v1182
    %v1187 = vrsqrt.pop %v772
    %v1188 = vmul.f32 %v1187, %v772
    %v1189 = vmul.f32 %v1188, %v1187
    %v1190 = vmul.f32 0.5, %v1189
    %v1191 = vsub.f32 1.5, %v1190
    %v1192 = vmul.f32 %v1187, %v1191
    %vm1193 = vweird.f32 %v772
    %vm1194 = vweird.f32 %v1187
    %vm1195 = vmor %vm1193, %vm1194
    %v1196 = vsel %vm1195, %v1187, %v1192
    %v1197 = vrsqrt.pop %v773
    %v1198 = vmul.f32 %v1197, %v773
    %v1199 = vmul.f32 %v1198, %v1197
    %v1200 = vmul.f32 0.5, %v1199
    %v1201 = vsub.f32 1.5, %v1200
    %v1202 = vmul.f32 %v1197, %v1201
    %vm1203 = vweird.f32 %v773
    %vm1204 = vweird.f32 %v1197
    %vm1205 = vmor %vm1203, %vm1204
    %v1206 = vsel %vm1205, %v1197, %v1202
    %v1207 = vrsqrt.pop %v774
    %v1208 = vmul.f32 %v1207, %v774
    %v1209 = vmul.f32 %v1208, %v1207
    %v1210 = vmul.f32 0.5, %v1209
    %v1211 = vsub.f32 1.5, %v1210
    %v1212 = vmul.f32 %v1207, %v1211
    %vm1213 = vweird.f32 %v774
    %vm1214 = vweird.f32 %v1207
    %vm1215 = vmor %vm1213, %vm1214
    %v1216 = vsel %vm1215, %v1207, %v1212
    %v1217 = vrsqrt.pop %v775
    %v1218 = vmul.f32 %v1217, %v775
    %v1219 = vmul.f32 %v1218, %v1217
    %v1220 = vmul.f32 0.5, %v1219
    %v1221 = vsub.f32 1.5, %v1220
    %v1222 = vmul.f32 %v1217, %v1221
    %vm1223 = vweird.f32 %v775
    %vm1224 = vweird.f32 %v1217
    %vm1225 = vmor %vm1223, %vm1224
    %v1226 = vsel %vm1225, %v1217, %v1222
    %v1227 = vrsqrt.pop %v776
    %v1228 = vmul.f32 %v1227, %v776
    %v1229 = vmul.f32 %v1228, %v1227
    %v1230 = vmul.f32 0.5, %v1229
    %v1231 = vsub.f32 1.5, %v1230
    %v1232 = vmul.f32 %v1227, %v1231
    %vm1233 = vweird.f32 %v776
    %vm1234 = vweird.f32 %v1227
    %vm1235 = vmor %vm1233, %vm1234
    %v1236 = vsel %vm1235, %v1227, %v1232
    %v1237 = vrsqrt.pop %v777
    %v1238 = vmul.f32 %v1237, %v777
    %v1239 = vmul.f32 %v1238, %v1237
    %v1240 = vmul.f32 0.5, %v1239
    %v1241 = vsub.f32 1.5, %v1240
    %v1242 = vmul.f32 %v1237, %v1241
    %vm1243 = vweird.f32 %v777
    %vm1244 = vweird.f32 %v1237
    %vm1245 = vmor %vm1243, %vm1244
    %v1246 = vsel %vm1245, %v1237, %v1242
    %v1247 = vrsqrt.pop %v778
    %v1248 = vmul.f32 %v1247, %v778
    %v1249 = vmul.f32 %v1248, %v1247
    %v1250 = vmul.f32 0.5, %v1249
    %v1251 = vsub.f32 1.5, %v1250
    %v1252 = vmul.f32 %v1247, %v1251
    %vm1253 = vweird.f32 %v778
    %vm1254 = vweird.f32 %v1247
    %vm1255 = vmor %vm1253, %vm1254
    %v1256 = vsel %vm1255, %v1247, %v1252
    %v1257 = vrsqrt.pop %v779
    %v1258 = vmul.f32 %v1257, %v779
    %v1259 = vmul.f32 %v1258, %v1257
    %v1260 = vmul.f32 0.5, %v1259
    %v1261 = vsub.f32 1.5, %v1260
    %v1262 = vmul.f32 %v1257, %v1261
    %vm1263 = vweird.f32 %v779
    %vm1264 = vweird.f32 %v1257
    %vm1265 = vmor %vm1263, %vm1264
    %v1266 = vsel %vm1265, %v1257, %v1262
    %v1267 = vrsqrt.pop %v780
    %v1268 = vmul.f32 %v1267, %v780
    %v1269 = vmul.f32 %v1268, %v1267
    %v1270 = vmul.f32 0.5, %v1269
    %v1271 = vsub.f32 1.5, %v1270
    %v1272 = vmul.f32 %v1267, %v1271
    %vm1273 = vweird.f32 %v780
    %vm1274 = vweird.f32 %v1267
    %vm1275 = vmor %vm1273, %vm1274
    %v1276 = vsel %vm1275, %v1267, %v1272
    %v1277 = vrsqrt.pop %v781
    %v1278 = vmul.f32 %v1277, %v781
    %v1279 = vmul.f32 %v1278, %v1277
    %v1280 = vmul.f32 0.5, %v1279
    %v1281 = vsub.f32 1.5, %v1280
    %v1282 = vmul.f32 %v1277, %v1281
    %vm1283 = vweird.f32 %v781
    %vm1284 = vweird.f32 %v1277
    %vm1285 = vmor %vm1283, %vm1284
    %v1286 = vsel %vm1285, %v1277, %v1282
    %v1287 = vrsqrt.pop %v782
    %v1288 = vmul.f32 %v1287, %v782
    %v1289 = vmul.f32 %v1288, %v1287
    %v1290 = vmul.f32 0.5, %v1289
    %v1291 = vsub.f32 1.5, %v1290
    %v1292 = vmul.f32 %v1287, %v1291
    %vm1293 = vweird.f32 %v782
    %vm1294 = vweird.f32 %v1287
    %vm1295 = vmor %vm1293, %vm1294
    %v1296 = vsel %vm1295, %v1287, %v1292
    %v1297 = vrsqrt.pop %v783
    %v1298 = vmul.f32 %v1297, %v783
    %v1299 = vmul.f32 %v1298, %v1297
    %v1300 = vmul.f32 0.5, %v1299
    %v1301 = vsub.f32 1.5, %v1300
    %v1302 = vmul.f32 %v1297, %v1301
    %vm1303 = vweird.f32 %v783
    %vm1304 = vweird.f32 %v1297
    %vm1305 = vmor %vm1303, %vm1304
    %v1306 = vsel %vm1305, %v1297, %v1302
    %v1307 = vrsqrt.pop %v784
    %v1308 = vmul.f32 %v1307, %v784
    %v1309 = vmul.f32 %v1308, %v1307
    %v1310 = vmul.f32 0.5, %v1309
    %v1311 = vsub.f32 1.5, %v1310
    %v1312 = vmul.f32 %v1307, %v1311
    %vm1313 = vweird.f32 %v784
    %vm1314 = vweird.f32 %v1307
    %vm1315 = vmor %vm1313, %vm1314
    %v1316 = vsel %vm1315, %v1307, %v1312
    %v1317 = vrsqrt.pop %v785
    %v1318 = vmul.f32 %v1317, %v785
    %v1319 = vmul.f32 %v1318, %v1317
    %v1320 = vmul.f32 0.5, %v1319
    %v1321 = vsub.f32 1.5, %v1320
    %v1322 = vmul.f32 %v1317, %v1321
    %vm1323 = vweird.f32 %v785
    %vm1324 = vweird.f32 %v1317
    %vm1325 = vmor %vm1323, %vm1324
    %v1326 = vsel %vm1325, %v1317, %v1322
    %v1327 = vrsqrt.pop %v786
    %v1328 = vmul.f32 %v1327, %v786
    %v1329 = vmul.f32 %v1328, %v1327
    %v1330 = vmul.f32 0.5, %v1329
    %v1331 = vsub.f32 1.5, %v1330
    %v1332 = vmul.f32 %v1327, %v1331
    %vm1333 = vweird.f32 %v786
    %vm1334 = vweird.f32 %v1327
    %vm1335 = vmor %vm1333, %vm1334
    %v1336 = vsel %vm1335, %v1327, %v1332
    %v1337 = vrsqrt.pop %v787
    %v1338 = vmul.f32 %v1337, %v787
    %v1339 = vmul.f32 %v1338, %v1337
    %v1340 = vmul.f32 0.5, %v1339
    %v1341 = vsub.f32 1.5, %v1340
    %v1342 = vmul.f32 %v1337, %v1341
    %vm1343 = vweird.f32 %v787
    %vm1344 = vweird.f32 %v1337
    %vm1345 = vmor %vm1343, %vm1344
    %v1346 = vsel %vm1345, %v1337, %v1342
    %v1347 = vrsqrt.pop %v788
    %v1348 = vmul.f32 %v1347, %v788
    %v1349 = vmul.f32 %v1348, %v1347
    %v1350 = vmul.f32 0.5, %v1349
    %v1351 = vsub.f32 1.5, %v1350
    %v1352 = vmul.f32 %v1347, %v1351
    %vm1353 = vweird.f32 %v788
    %vm1354 = vweird.f32 %v1347
    %vm1355 = vmor %vm1353, %vm1354
    %v1356 = vsel %vm1355, %v1347, %v1352
    %v1357 = vrsqrt.pop %v789
    %v1358 = vmul.f32 %v1357, %v789
    %v1359 = vmul.f32 %v1358, %v1357
    %v1360 = vmul.f32 0.5, %v1359
    %v1361 = vsub.f32 1.5, %v1360
    %v1362 = vmul.f32 %v1357, %v1361
    %vm1363 = vweird.f32 %v789
    %vm1364 = vweird.f32 %v1357
    %vm1365 = vmor %vm1363, %vm1364
    %v1366 = vsel %vm1365, %v1357, %v1362
    %v1367 = vrsqrt.pop %v790
    %v1368 = vmul.f32 %v1367, %v790
    %v1369 = vmul.f32 %v1368, %v1367
    %v1370 = vmul.f32 0.5, %v1369
    %v1371 = vsub.f32 1.5, %v1370
    %v1372 = vmul.f32 %v1367, %v1371
    %vm1373 = vweird.f32 %v790
    %vm1374 = vweird.f32 %v1367
    %vm1375 = vmor %vm1373, %vm1374
    %v1376 = vsel %vm1375, %v1367, %v1372
    %v1377 = vrsqrt.pop %v791
    %v1378 = vmul.f32 %v1377, %v791
    %v1379 = vmul.f32 %v1378, %v1377
    %v1380 = vmul.f32 0.5, %v1379
    %v1381 = vsub.f32 1.5, %v1380
    %v1382 = vmul.f32 %v1377, %v1381
    %vm1383 = vweird.f32 %v791
    %vm1384 = vweird.f32 %v1377
    %vm1385 = vmor %vm1383, %vm1384
    %v1386 = vsel %vm1385, %v1377, %v1382
    %v1387 = vrsqrt.pop %v792
    %v1388 = vmul.f32 %v1387, %v792
    %v1389 = vmul.f32 %v1388, %v1387
    %v1390 = vmul.f32 0.5, %v1389
    %v1391 = vsub.f32 1.5, %v1390
    %v1392 = vmul.f32 %v1387, %v1391
    %vm1393 = vweird.f32 %v792
    %vm1394 = vweird.f32 %v1387
    %vm1395 = vmor %vm1393, %vm1394
    %v1396 = vsel %vm1395, %v1387, %v1392
    %v1397 = vrsqrt.pop %v793
    %v1398 = vmul.f32 %v1397, %v793
    %v1399 = vmul.f32 %v1398, %v1397
    %v1400 = vmul.f32 0.5, %v1399
    %v1401 = vsub.f32 1.5, %v1400
    %v1402 = vmul.f32 %v1397, %v1401
    %vm1403 = vweird.f32 %v793
    %vm1404 = vweird.f32 %v1397
    %vm1405 = vmor %vm1403, %vm1404
    %v1406 = vsel %vm1405, %v1397, %v1402
    %v1407 = vrsqrt.pop %v794
    %v1408 = vmul.f32 %v1407, %v794
    %v1409 = vmul.f32 %v1408, %v1407
    %v1410 = vmul.f32 0.5, %v1409
    %v1411 = vsub.f32 1.5, %v1410
    %v1412 = vmul.f32 %v1407, %v1411
    %vm1413 = vweird.f32 %v794
    %vm1414 = vweird.f32 %v1407
    %vm1415 = vmor %vm1413, %vm1414
    %v1416 = vsel %vm1415, %v1407, %v1412
    %v1417 = vrsqrt.pop %v795
    %v1418 = vmul.f32 %v1417, %v795
    %v1419 = vmul.f32 %v1418, %v1417
    %v1420 = vmul.f32 0.5, %v1419
    %v1421 = vsub.f32 1.5, %v1420
    %v1422 = vmul.f32 %v1417, %v1421
    %vm1423 = vweird.f32 %v795
    %vm1424 = vweird.f32 %v1417
    %vm1425 = vmor %vm1423, %vm1424
    %v1426 = vsel %vm1425, %v1417, %v1422
    %v1427 = vrsqrt.pop %v796
    %v1428 = vmul.f32 %v1427, %v796
    %v1429 = vmul.f32 %v1428, %v1427
    %v1430 = vmul.f32 0.5, %v1429
    %v1431 = vsub.f32 1.5, %v1430
    %v1432 = vmul.f32 %v1427, %v1431
    %vm1433 = vweird.f32 %v796
    %vm1434 = vweird.f32 %v1427
    %vm1435 = vmor %vm1433, %vm1434
    %v1436 = vsel %vm1435, %v1427, %v1432
    %v1437 = vmul.f32 %v349, %v806
    %v1438 = vmul.f32 %v350, %v816
    %v1439 = vmul.f32 %v351, %v826
    %v1440 = vmul.f32 %v352, %v836
    %v1441 = vmul.f32 %v353, %v846
    %v1442 = vmul.f32 %v354, %v856
    %v1443 = vmul.f32 %v355, %v866
    %v1444 = vmul.f32 %v356, %v876
    %v1445 = vmul.f32 %v357, %v886
    %v1446 = vmul.f32 %v358, %v896
    %v1447 = vmul.f32 %v359, %v906
    %v1448 = vmul.f32 %v360, %v916
    %v1449 = vmul.f32 %v361, %v926
    %v1450 = vmul.f32 %v362, %v936
    %v1451 = vmul.f32 %v363, %v946
    %v1452 = vmul.f32 %v364, %v956
    %v1453 = vmul.f32 %v365, %v966
    %v1454 = vmul.f32 %v366, %v976
    %v1455 = vmul.f32 %v367, %v986
    %v1456 = vmul.f32 %v368, %v996
    %v1457 = vmul.f32 %v369, %v1006
    %v1458 = vmul.f32 %v370, %v1016
    %v1459 = vmul.f32 %v371, %v1026
    %v1460 = vmul.f32 %v372, %v1036
    %v1461 = vmul.f32 %v373, %v1046
    %v1462 = vmul.f32 %v374, %v1056
    %v1463 = vmul.f32 %v375, %v1066
    %v1464 = vmul.f32 %v376, %v1076
    %v1465 = vmul.f32 %v377, %v1086
    %v1466 = vmul.f32 %v378, %v1096
    %v1467 = vmul.f32 %v379, %v1106
    %v1468 = vmul.f32 %v380, %v1116
    %v1469 = vmul.f32 %v381, %v1126
    %v1470 = vmul.f32 %v382, %v1136
    %v1471 = vmul.f32 %v383, %v1146
    %v1472 = vmul.f32 %v384, %v1156
    %v1473 = vmul.f32 %v385, %v1166
    %v1474 = vmul.f32 %v386, %v1176
    %v1475 = vmul.f32 %v387, %v1186
    %v1476 = vmul.f32 %v388, %v1196
    %v1477 = vmul.f32 %v389, %v1206
    %v1478 = vmul.f32 %v390, %v1216
    %v1479 = vmul.f32 %v391, %v1226
    %v1480 = vmul.f32 %v392, %v1236
    %v1481 = vmul.f32 %v393, %v1246
    %v1482 = vmul.f32 %v394, %v1256
    %v1483 = vmul.f32 %v395, %v1266
    %v1484 = vmul.f32 %v396, %v1276
    %v1485 = vmul.f32 %v397, %v1286
    %v1486 = vmul.f32 %v398, %v1296
    %v1487 = vmul.f32 %v399, %v1306
    %v1488 = vmul.f32 %v400, %v1316
    %v1489 = vmul.f32 %v401, %v1326
    %v1490 = vmul.f32 %v402, %v1336
    %v1491 = vmul.f32 %v403, %v1346
    %v1492 = vmul.f32 %v404, %v1356
    %v1493 = vmul.f32 %v405, %v1366
    %v1494 = vmul.f32 %v406, %v1376
    %v1495 = vmul.f32 %v407, %v1386
    %v1496 = vmul.f32 %v408, %v1396
    %v1497 = vmul.f32 %v409, %v1406
    %v1498 = vmul.f32 %v410, %v1416
    %v1499 = vmul.f32 %v411, %v1426
    %v1500 = vmul.f32 %v412, %v1436
    %v1501 = vld [vmem:[%s1] sm:$0x1]
    %v1503 = vperm.slane %v1501, 0
    %v1505 = vmul.f32 %v1437, %v1503
    %v1506 = vmul.f32 %v1438, %v1503
    %v1507 = vmul.f32 %v1439, %v1503
    %v1508 = vmul.f32 %v1440, %v1503
    %v1509 = vmul.f32 %v1441, %v1503
    %v1510 = vmul.f32 %v1442, %v1503
    %v1511 = vmul.f32 %v1443, %v1503
    %v1512 = vmul.f32 %v1444, %v1503
    %v1513 = vmul.f32 %v1445, %v1503
    %v1514 = vmul.f32 %v1446, %v1503
    %v1515 = vmul.f32 %v1447, %v1503
    %v1516 = vmul.f32 %v1448, %v1503
    %v1517 = vmul.f32 %v1449, %v1503
    %v1518 = vmul.f32 %v1450, %v1503
    %v1519 = vmul.f32 %v1451, %v1503
    %v1520 = vmul.f32 %v1452, %v1503
    %v1521 = vmul.f32 %v1453, %v1503
    %v1522 = vmul.f32 %v1454, %v1503
    %v1523 = vmul.f32 %v1455, %v1503
    %v1524 = vmul.f32 %v1456, %v1503
    %v1525 = vmul.f32 %v1457, %v1503
    %v1526 = vmul.f32 %v1458, %v1503
    %v1527 = vmul.f32 %v1459, %v1503
    %v1528 = vmul.f32 %v1460, %v1503
    %v1529 = vmul.f32 %v1461, %v1503
    %v1530 = vmul.f32 %v1462, %v1503
    %v1531 = vmul.f32 %v1463, %v1503
    %v1532 = vmul.f32 %v1464, %v1503
    %v1533 = vmul.f32 %v1465, %v1503
    %v1534 = vmul.f32 %v1466, %v1503
    %v1535 = vmul.f32 %v1467, %v1503
    %v1536 = vmul.f32 %v1468, %v1503
    %v1537 = vmul.f32 %v1469, %v1503
    %v1538 = vmul.f32 %v1470, %v1503
    %v1539 = vmul.f32 %v1471, %v1503
    %v1540 = vmul.f32 %v1472, %v1503
    %v1541 = vmul.f32 %v1473, %v1503
    %v1542 = vmul.f32 %v1474, %v1503
    %v1543 = vmul.f32 %v1475, %v1503
    %v1544 = vmul.f32 %v1476, %v1503
    %v1545 = vmul.f32 %v1477, %v1503
    %v1546 = vmul.f32 %v1478, %v1503
    %v1547 = vmul.f32 %v1479, %v1503
    %v1548 = vmul.f32 %v1480, %v1503
    %v1549 = vmul.f32 %v1481, %v1503
    %v1550 = vmul.f32 %v1482, %v1503
    %v1551 = vmul.f32 %v1483, %v1503
    %v1552 = vmul.f32 %v1484, %v1503
    %v1553 = vmul.f32 %v1485, %v1503
    %v1554 = vmul.f32 %v1486, %v1503
    %v1555 = vmul.f32 %v1487, %v1503
    %v1556 = vmul.f32 %v1488, %v1503
    %v1557 = vmul.f32 %v1489, %v1503
    %v1558 = vmul.f32 %v1490, %v1503
    %v1559 = vmul.f32 %v1491, %v1503
    %v1560 = vmul.f32 %v1492, %v1503
    %v1561 = vmul.f32 %v1493, %v1503
    %v1562 = vmul.f32 %v1494, %v1503
    %v1563 = vmul.f32 %v1495, %v1503
    %v1564 = vmul.f32 %v1496, %v1503
    %v1565 = vmul.f32 %v1497, %v1503
    %v1566 = vmul.f32 %v1498, %v1503
    %v1567 = vmul.f32 %v1499, %v1503
    %v1568 = vmul.f32 %v1500, %v1503
    %v1569 = vld [vmem:[%s2] sm:$0x1]
    %v1571 = vperm.slane %v1569, 0
    %v1573 = vadd.f32 %v1505, %v1571
    %v1574 = vadd.f32 %v1506, %v1571
    %v1575 = vadd.f32 %v1507, %v1571
    %v1576 = vadd.f32 %v1508, %v1571
    %v1577 = vadd.f32 %v1509, %v1571
    %v1578 = vadd.f32 %v1510, %v1571
    %v1579 = vadd.f32 %v1511, %v1571
    %v1580 = vadd.f32 %v1512, %v1571
    %v1581 = vadd.f32 %v1513, %v1571
    %v1582 = vadd.f32 %v1514, %v1571
    %v1583 = vadd.f32 %v1515, %v1571
    %v1584 = vadd.f32 %v1516, %v1571
    %v1585 = vadd.f32 %v1517, %v1571
    %v1586 = vadd.f32 %v1518, %v1571
    %v1587 = vadd.f32 %v1519, %v1571
    %v1588 = vadd.f32 %v1520, %v1571
    %v1589 = vadd.f32 %v1521, %v1571
    %v1590 = vadd.f32 %v1522, %v1571
    %v1591 = vadd.f32 %v1523, %v1571
    %v1592 = vadd.f32 %v1524, %v1571
    %v1593 = vadd.f32 %v1525, %v1571
    %v1594 = vadd.f32 %v1526, %v1571
    %v1595 = vadd.f32 %v1527, %v1571
    %v1596 = vadd.f32 %v1528, %v1571
    %v1597 = vadd.f32 %v1529, %v1571
    %v1598 = vadd.f32 %v1530, %v1571
    %v1599 = vadd.f32 %v1531, %v1571
    %v1600 = vadd.f32 %v1532, %v1571
    %v1601 = vadd.f32 %v1533, %v1571
    %v1602 = vadd.f32 %v1534, %v1571
    %v1603 = vadd.f32 %v1535, %v1571
    %v1604 = vadd.f32 %v1536, %v1571
    %v1605 = vadd.f32 %v1537, %v1571
    %v1606 = vadd.f32 %v1538, %v1571
    %v1607 = vadd.f32 %v1539, %v1571
    %v1608 = vadd.f32 %v1540, %v1571
    %v1609 = vadd.f32 %v1541, %v1571
    %v1610 = vadd.f32 %v1542, %v1571
    %v1611 = vadd.f32 %v1543, %v1571
    %v1612 = vadd.f32 %v1544, %v1571
    %v1613 = vadd.f32 %v1545, %v1571
    %v1614 = vadd.f32 %v1546, %v1571
    %v1615 = vadd.f32 %v1547, %v1571
    %v1616 = vadd.f32 %v1548, %v1571
    %v1617 = vadd.f32 %v1549, %v1571
    %v1618 = vadd.f32 %v1550, %v1571
    %v1619 = vadd.f32 %v1551, %v1571
    %v1620 = vadd.f32 %v1552, %v1571
    %v1621 = vadd.f32 %v1553, %v1571
    %v1622 = vadd.f32 %v1554, %v1571
    %v1623 = vadd.f32 %v1555, %v1571
    %v1624 = vadd.f32 %v1556, %v1571
    %v1625 = vadd.f32 %v1557, %v1571
    %v1626 = vadd.f32 %v1558, %v1571
    %v1627 = vadd.f32 %v1559, %v1571
    %v1628 = vadd.f32 %v1560, %v1571
    %v1629 = vadd.f32 %v1561, %v1571
    %v1630 = vadd.f32 %v1562, %v1571
    %v1631 = vadd.f32 %v1563, %v1571
    %v1632 = vadd.f32 %v1564, %v1571
    %v1633 = vadd.f32 %v1565, %v1571
    %v1634 = vadd.f32 %v1566, %v1571
    %v1635 = vadd.f32 %v1567, %v1571
    %v1636 = vadd.f32 %v1568, %v1571
    %v1637 = vld [vmem:[%s3] sm:$0xff]
    %v1638 = vld [vmem:[%s3 + $0x8] sm:$0xff]
    %v1639 = vld [vmem:[%s3 + $0x10] sm:$0xff]
    %v1640 = vld [vmem:[%s3 + $0x18] sm:$0xff]
    %v1641 = vld [vmem:[%s4] sm:$0x1]
    %v1643 = vperm.slane %v1641, 0
    %v1646 = vsel %vm85, %v1573, 0
    %v1649 = vsel %vm85, %v1574, 0
    %v1652 = vsel %vm85, %v1575, 0
    %v1655 = vsel %vm85, %v1576, 0
    %v1658 = vsel %vm85, %v1577, 0
    %v1661 = vsel %vm85, %v1578, 0
    %v1664 = vsel %vm85, %v1579, 0
    %v1667 = vsel %vm85, %v1580, 0
    %v1670 = vsel %vm85, %v1581, 0
    %v1673 = vsel %vm85, %v1582, 0
    %v1676 = vsel %vm85, %v1583, 0
    %v1679 = vsel %vm85, %v1584, 0
    %v1682 = vsel %vm85, %v1585, 0
    %v1685 = vsel %vm85, %v1586, 0
    %v1688 = vsel %vm85, %v1587, 0
    %v1691 = vsel %vm85, %v1588, 0
    %v1694 = vsel %vm85, %v1589, 0
    %v1697 = vsel %vm85, %v1590, 0
    %v1700 = vsel %vm85, %v1591, 0
    %v1703 = vsel %vm85, %v1592, 0
    %v1706 = vsel %vm85, %v1593, 0
    %v1709 = vsel %vm85, %v1594, 0
    %v1712 = vsel %vm85, %v1595, 0
    %v1715 = vsel %vm85, %v1596, 0
    %v1718 = vsel %vm85, %v1597, 0
    %v1721 = vsel %vm85, %v1598, 0
    %v1724 = vsel %vm85, %v1599, 0
    %v1727 = vsel %vm85, %v1600, 0
    %v1730 = vsel %vm85, %v1601, 0
    %v1733 = vsel %vm85, %v1602, 0
    %v1736 = vsel %vm85, %v1603, 0
    %v1739 = vsel %vm85, %v1604, 0
    %v1742 = vsel %vm85, %v1605, 0
    %v1745 = vsel %vm85, %v1606, 0
    %v1748 = vsel %vm85, %v1607, 0
    %v1751 = vsel %vm85, %v1608, 0
    %v1754 = vsel %vm85, %v1609, 0
    %v1757 = vsel %vm85, %v1610, 0
    %v1760 = vsel %vm85, %v1611, 0
    %v1763 = vsel %vm85, %v1612, 0
    %v1766 = vsel %vm85, %v1613, 0
    %v1769 = vsel %vm85, %v1614, 0
    %v1772 = vsel %vm85, %v1615, 0
    %v1775 = vsel %vm85, %v1616, 0
    %v1778 = vsel %vm85, %v1617, 0
    %v1781 = vsel %vm85, %v1618, 0
    %v1784 = vsel %vm85, %v1619, 0
    %v1787 = vsel %vm85, %v1620, 0
    %v1790 = vsel %vm85, %v1621, 0
    %v1793 = vsel %vm85, %v1622, 0
    %v1796 = vsel %vm85, %v1623, 0
    %v1799 = vsel %vm85, %v1624, 0
    %v1802 = vsel %vm85, %v1625, 0
    %v1805 = vsel %vm85, %v1626, 0
    %v1808 = vsel %vm85, %v1627, 0
    %v1811 = vsel %vm85, %v1628, 0
    %v1814 = vsel %vm85, %v1629, 0
    %v1817 = vsel %vm85, %v1630, 0
    %v1820 = vsel %vm85, %v1631, 0
    %v1823 = vsel %vm85, %v1632, 0
    %v1826 = vsel %vm85, %v1633, 0
    %v1829 = vsel %vm85, %v1634, 0
    %v1832 = vsel %vm85, %v1635, 0
    %v1835 = vsel %vm85, %v1636, 0
    %1837 = vmatpush.msra.mxu0 0.0
    %1838 = vmatpush.msra.mxu0 0.0
    %1839 = vmatpush.msra.mxu0 0.0
    %1840 = vmatpush.msra.mxu0 0.0
    %1841 = vmatpush.msra.mxu0 0.0
    %1842 = vmatpush.msra.mxu0 0.0
    %1843 = vmatpush.msra.mxu0 0.0
    %1844 = vmatpush.msra.mxu0 0.0
    %1845 = vmatpush.msra.mxu0 0.0
    %1846 = vmatpush.msra.mxu0 0.0
    %1847 = vmatpush.msra.mxu0 0.0
    %1848 = vmatpush.msra.mxu0 0.0
    %1849 = vmatpush.msra.mxu0 %v1640
    %1850 = vmatpush.msra.mxu0 %v1639
    %1851 = vmatpush.msra.mxu0 %v1638
    %1852 = vmatpush.msra.mxu0 %v1637
    %1853 = vmatmul.f32.gmra.mxu0 %v1646
    %v1854 = vpop.f32.mrf.mxu0
    %v1855 = vadd.f32 %v1643, %v1854
    %1856 = vmatmul.f32.gmra.mxu0 %v1649
    %v1857 = vpop.f32.mrf.mxu0
    %v1858 = vadd.f32 %v1643, %v1857
    %1859 = vmatmul.f32.gmra.mxu0 %v1652
    %v1860 = vpop.f32.mrf.mxu0
    %v1861 = vadd.f32 %v1643, %v1860
    %1862 = vmatmul.f32.gmra.mxu0 %v1655
    %v1863 = vpop.f32.mrf.mxu0
    %v1864 = vadd.f32 %v1643, %v1863
    %1865 = vmatmul.f32.gmra.mxu0 %v1658
    %v1866 = vpop.f32.mrf.mxu0
    %v1867 = vadd.f32 %v1643, %v1866
    %1868 = vmatmul.f32.gmra.mxu0 %v1661
    %v1869 = vpop.f32.mrf.mxu0
    %v1870 = vadd.f32 %v1643, %v1869
    %1871 = vmatmul.f32.gmra.mxu0 %v1664
    %v1872 = vpop.f32.mrf.mxu0
    %v1873 = vadd.f32 %v1643, %v1872
    %1874 = vmatmul.f32.gmra.mxu0 %v1667
    %v1875 = vpop.f32.mrf.mxu0
    %v1876 = vadd.f32 %v1643, %v1875
    %1877 = vmatmul.f32.gmra.mxu0 %v1670
    %v1878 = vpop.f32.mrf.mxu0
    %v1879 = vadd.f32 %v1643, %v1878
    %1880 = vmatmul.f32.gmra.mxu0 %v1673
    %v1881 = vpop.f32.mrf.mxu0
    %v1882 = vadd.f32 %v1643, %v1881
    %1883 = vmatmul.f32.gmra.mxu0 %v1676
    %v1884 = vpop.f32.mrf.mxu0
    %v1885 = vadd.f32 %v1643, %v1884
    %1886 = vmatmul.f32.gmra.mxu0 %v1679
    %v1887 = vpop.f32.mrf.mxu0
    %v1888 = vadd.f32 %v1643, %v1887
    %1889 = vmatmul.f32.gmra.mxu0 %v1682
    %v1890 = vpop.f32.mrf.mxu0
    %v1891 = vadd.f32 %v1643, %v1890
    %1892 = vmatmul.f32.gmra.mxu0 %v1685
    %v1893 = vpop.f32.mrf.mxu0
    %v1894 = vadd.f32 %v1643, %v1893
    %1895 = vmatmul.f32.gmra.mxu0 %v1688
    %v1896 = vpop.f32.mrf.mxu0
    %v1897 = vadd.f32 %v1643, %v1896
    %1898 = vmatmul.f32.gmra.mxu0 %v1691
    %v1899 = vpop.f32.mrf.mxu0
    %v1900 = vadd.f32 %v1643, %v1899
    %1901 = vmatmul.f32.gmra.mxu0 %v1694
    %v1902 = vpop.f32.mrf.mxu0
    %v1903 = vadd.f32 %v1643, %v1902
    %1904 = vmatmul.f32.gmra.mxu0 %v1697
    %v1905 = vpop.f32.mrf.mxu0
    %v1906 = vadd.f32 %v1643, %v1905
    %1907 = vmatmul.f32.gmra.mxu0 %v1700
    %v1908 = vpop.f32.mrf.mxu0
    %v1909 = vadd.f32 %v1643, %v1908
    %1910 = vmatmul.f32.gmra.mxu0 %v1703
    %v1911 = vpop.f32.mrf.mxu0
    %v1912 = vadd.f32 %v1643, %v1911
    %1913 = vmatmul.f32.gmra.mxu0 %v1706
    %v1914 = vpop.f32.mrf.mxu0
    %v1915 = vadd.f32 %v1643, %v1914
    %1916 = vmatmul.f32.gmra.mxu0 %v1709
    %v1917 = vpop.f32.mrf.mxu0
    %v1918 = vadd.f32 %v1643, %v1917
    %1919 = vmatmul.f32.gmra.mxu0 %v1712
    %v1920 = vpop.f32.mrf.mxu0
    %v1921 = vadd.f32 %v1643, %v1920
    %1922 = vmatmul.f32.gmra.mxu0 %v1715
    %v1923 = vpop.f32.mrf.mxu0
    %v1924 = vadd.f32 %v1643, %v1923
    %1925 = vmatmul.f32.gmra.mxu0 %v1718
    %v1926 = vpop.f32.mrf.mxu0
    %v1927 = vadd.f32 %v1643, %v1926
    %1928 = vmatmul.f32.gmra.mxu0 %v1721
    %v1929 = vpop.f32.mrf.mxu0
    %v1930 = vadd.f32 %v1643, %v1929
    %1931 = vmatmul.f32.gmra.mxu0 %v1724
    %v1932 = vpop.f32.mrf.mxu0
    %v1933 = vadd.f32 %v1643, %v1932
    %1934 = vmatmul.f32.gmra.mxu0 %v1727
    %v1935 = vpop.f32.mrf.mxu0
    %v1936 = vadd.f32 %v1643, %v1935
    %1937 = vmatmul.f32.gmra.mxu0 %v1730
    %v1938 = vpop.f32.mrf.mxu0
    %v1939 = vadd.f32 %v1643, %v1938
    %1940 = vmatmul.f32.gmra.mxu0 %v1733
    %v1941 = vpop.f32.mrf.mxu0
    %v1942 = vadd.f32 %v1643, %v1941
    %1943 = vmatmul.f32.gmra.mxu0 %v1736
    %v1944 = vpop.f32.mrf.mxu0
    %v1945 = vadd.f32 %v1643, %v1944
    %1946 = vmatmul.f32.gmra.mxu0 %v1739
    %v1947 = vpop.f32.mrf.mxu0
    %v1948 = vadd.f32 %v1643, %v1947
    %1949 = vmatmul.f32.gmra.mxu0 %v1742
    %v1950 = vpop.f32.mrf.mxu0
    %v1951 = vadd.f32 %v1643, %v1950
    %1952 = vmatmul.f32.gmra.mxu0 %v1745
    %v1953 = vpop.f32.mrf.mxu0
    %v1954 = vadd.f32 %v1643, %v1953
    %1955 = vmatmul.f32.gmra.mxu0 %v1748
    %v1956 = vpop.f32.mrf.mxu0
    %v1957 = vadd.f32 %v1643, %v1956
    %1958 = vmatmul.f32.gmra.mxu0 %v1751
    %v1959 = vpop.f32.mrf.mxu0
    %v1960 = vadd.f32 %v1643, %v1959
    %1961 = vmatmul.f32.gmra.mxu0 %v1754
    %v1962 = vpop.f32.mrf.mxu0
    %v1963 = vadd.f32 %v1643, %v1962
    %1964 = vmatmul.f32.gmra.mxu0 %v1757
    %v1965 = vpop.f32.mrf.mxu0
    %v1966 = vadd.f32 %v1643, %v1965
    %1967 = vmatmul.f32.gmra.mxu0 %v1760
    %v1968 = vpop.f32.mrf.mxu0
    %v1969 = vadd.f32 %v1643, %v1968
    %1970 = vmatmul.f32.gmra.mxu0 %v1763
    %v1971 = vpop.f32.mrf.mxu0
    %v1972 = vadd.f32 %v1643, %v1971
    %1973 = vmatmul.f32.gmra.mxu0 %v1766
    %v1974 = vpop.f32.mrf.mxu0
    %v1975 = vadd.f32 %v1643, %v1974
    %1976 = vmatmul.f32.gmra.mxu0 %v1769
    %v1977 = vpop.f32.mrf.mxu0
    %v1978 = vadd.f32 %v1643, %v1977
    %1979 = vmatmul.f32.gmra.mxu0 %v1772
    %v1980 = vpop.f32.mrf.mxu0
    %v1981 = vadd.f32 %v1643, %v1980
    %1982 = vmatmul.f32.gmra.mxu0 %v1775
    %v1983 = vpop.f32.mrf.mxu0
    %v1984 = vadd.f32 %v1643, %v1983
    %1985 = vmatmul.f32.gmra.mxu0 %v1778
    %v1986 = vpop.f32.mrf.mxu0
    %v1987 = vadd.f32 %v1643, %v1986
    %1988 = vmatmul.f32.gmra.mxu0 %v1781
    %v1989 = vpop.f32.mrf.mxu0
    %v1990 = vadd.f32 %v1643, %v1989
    %1991 = vmatmul.f32.gmra.mxu0 %v1784
    %v1992 = vpop.f32.mrf.mxu0
    %v1993 = vadd.f32 %v1643, %v1992
    %1994 = vmatmul.f32.gmra.mxu0 %v1787
    %v1995 = vpop.f32.mrf.mxu0
    %v1996 = vadd.f32 %v1643, %v1995
    %1997 = vmatmul.f32.gmra.mxu0 %v1790
    %v1998 = vpop.f32.mrf.mxu0
    %v1999 = vadd.f32 %v1643, %v1998
    %2000 = vmatmul.f32.gmra.mxu0 %v1793
    %v2001 = vpop.f32.mrf.mxu0
    %v2002 = vadd.f32 %v1643, %v2001
    %2003 = vmatmul.f32.gmra.mxu0 %v1796
    %v2004 = vpop.f32.mrf.mxu0
    %v2005 = vadd.f32 %v1643, %v2004
    %2006 = vmatmul.f32.gmra.mxu0 %v1799
    %v2007 = vpop.f32.mrf.mxu0
    %v2008 = vadd.f32 %v1643, %v2007
    %2009 = vmatmul.f32.gmra.mxu0 %v1802
    %v2010 = vpop.f32.mrf.mxu0
    %v2011 = vadd.f32 %v1643, %v2010
    %2012 = vmatmul.f32.gmra.mxu0 %v1805
    %v2013 = vpop.f32.mrf.mxu0
    %v2014 = vadd.f32 %v1643, %v2013
    %2015 = vmatmul.f32.gmra.mxu0 %v1808
    %v2016 = vpop.f32.mrf.mxu0
    %v2017 = vadd.f32 %v1643, %v2016
    %2018 = vmatmul.f32.gmra.mxu0 %v1811
    %v2019 = vpop.f32.mrf.mxu0
    %v2020 = vadd.f32 %v1643, %v2019
    %2021 = vmatmul.f32.gmra.mxu0 %v1814
    %v2022 = vpop.f32.mrf.mxu0
    %v2023 = vadd.f32 %v1643, %v2022
    %2024 = vmatmul.f32.gmra.mxu0 %v1817
    %v2025 = vpop.f32.mrf.mxu0
    %v2026 = vadd.f32 %v1643, %v2025
    %2027 = vmatmul.f32.gmra.mxu0 %v1820
    %v2028 = vpop.f32.mrf.mxu0
    %v2029 = vadd.f32 %v1643, %v2028
    %2030 = vmatmul.f32.gmra.mxu0 %v1823
    %v2031 = vpop.f32.mrf.mxu0
    %v2032 = vadd.f32 %v1643, %v2031
    %2033 = vmatmul.f32.gmra.mxu0 %v1826
    %v2034 = vpop.f32.mrf.mxu0
    %v2035 = vadd.f32 %v1643, %v2034
    %2036 = vmatmul.f32.gmra.mxu0 %v1829
    %v2037 = vpop.f32.mrf.mxu0
    %v2038 = vadd.f32 %v1643, %v2037
    %2039 = vmatmul.f32.gmra.mxu0 %v1832
    %v2040 = vpop.f32.mrf.mxu0
    %v2041 = vadd.f32 %v1643, %v2040
    %2042 = vmatmul.f32.gmra.mxu0 %v1835
    %v2043 = vpop.f32.mrf.mxu0
    %v2044 = vadd.f32 %v1643, %v2043
    %2045 = vdwg.mxu0
    %2046 = vst [vmem:[#allocation2] sm:$0xff] %v1855
    %2047 = vst [vmem:[#allocation2 + $0x8] sm:$0xff] %v1858
    %2048 = vst [vmem:[#allocation2 + $0x10] sm:$0xff] %v1861
    %2049 = vst [vmem:[#allocation2 + $0x18] sm:$0xff] %v1864
    %2050 = vst [vmem:[#allocation2 + $0x20] sm:$0xff] %v1867
    %2051 = vst [vmem:[#allocation2 + $0x28] sm:$0xff] %v1870
    %2052 = vst [vmem:[#allocation2 + $0x30] sm:$0xff] %v1873
    %2053 = vst [vmem:[#allocation2 + $0x38] sm:$0xff] %v1876
    %2054 = vst [vmem:[#allocation2 + $0x40] sm:$0xff] %v1879
    %2055 = vst [vmem:[#allocation2 + $0x48] sm:$0xff] %v1882
    %2056 = vst [vmem:[#allocation2 + $0x50] sm:$0xff] %v1885
    %2057 = vst [vmem:[#allocation2 + $0x58] sm:$0xff] %v1888
    %2058 = vst [vmem:[#allocation2 + $0x60] sm:$0xff] %v1891
    %2059 = vst [vmem:[#allocation2 + $0x68] sm:$0xff] %v1894
    %2060 = vst [vmem:[#allocation2 + $0x70] sm:$0xff] %v1897
    %2061 = vst [vmem:[#allocation2 + $0x78] sm:$0xff] %v1900
    %2062 = vst [vmem:[#allocation2 + $0x80] sm:$0xff] %v1903
    %2063 = vst [vmem:[#allocation2 + $0x88] sm:$0xff] %v1906
    %2064 = vst [vmem:[#allocation2 + $0x90] sm:$0xff] %v1909
    %2065 = vst [vmem:[#allocation2 + $0x98] sm:$0xff] %v1912
    %2066 = vst [vmem:[#allocation2 + $0xa0] sm:$0xff] %v1915
    %2067 = vst [vmem:[#allocation2 + $0xa8] sm:$0xff] %v1918
    %2068 = vst [vmem:[#allocation2 + $0xb0] sm:$0xff] %v1921
    %2069 = vst [vmem:[#allocation2 + $0xb8] sm:$0xff] %v1924
    %2070 = vst [vmem:[#allocation2 + $0xc0] sm:$0xff] %v1927
    %2071 = vst [vmem:[#allocation2 + $0xc8] sm:$0xff] %v1930
    %2072 = vst [vmem:[#allocation2 + $0xd0] sm:$0xff] %v1933
    %2073 = vst [vmem:[#allocation2 + $0xd8] sm:$0xff] %v1936
    %2074 = vst [vmem:[#allocation2 + $0xe0] sm:$0xff] %v1939
    %2075 = vst [vmem:[#allocation2 + $0xe8] sm:$0xff] %v1942
    %2076 = vst [vmem:[#allocation2 + $0xf0] sm:$0xff] %v1945
    %2077 = vst [vmem:[#allocation2 + $0xf8] sm:$0xff] %v1948
    %2078 = vst [vmem:[#allocation2 + $0x100] sm:$0xff] %v1951
    %2079 = vst [vmem:[#allocation2 + $0x108] sm:$0xff] %v1954
    %2080 = vst [vmem:[#allocation2 + $0x110] sm:$0xff] %v1957
    %2081 = vst [vmem:[#allocation2 + $0x118] sm:$0xff] %v1960
    %2082 = vst [vmem:[#allocation2 + $0x120] sm:$0xff] %v1963
    %2083 = vst [vmem:[#allocation2 + $0x128] sm:$0xff] %v1966
    %2084 = vst [vmem:[#allocation2 + $0x130] sm:$0xff] %v1969
    %2085 = vst [vmem:[#allocation2 + $0x138] sm:$0xff] %v1972
    %2086 = vst [vmem:[#allocation2 + $0x140] sm:$0xff] %v1975
    %2087 = vst [vmem:[#allocation2 + $0x148] sm:$0xff] %v1978
    %2088 = vst [vmem:[#allocation2 + $0x150] sm:$0xff] %v1981
    %2089 = vst [vmem:[#allocation2 + $0x158] sm:$0xff] %v1984
    %2090 = vst [vmem:[#allocation2 + $0x160] sm:$0xff] %v1987
    %2091 = vst [vmem:[#allocation2 + $0x168] sm:$0xff] %v1990
    %2092 = vst [vmem:[#allocation2 + $0x170] sm:$0xff] %v1993
    %2093 = vst [vmem:[#allocation2 + $0x178] sm:$0xff] %v1996
    %2094 = vst [vmem:[#allocation2 + $0x180] sm:$0xff] %v1999
    %2095 = vst [vmem:[#allocation2 + $0x188] sm:$0xff] %v2002
    %2096 = vst [vmem:[#allocation2 + $0x190] sm:$0xff] %v2005
    %2097 = vst [vmem:[#allocation2 + $0x198] sm:$0xff] %v2008
    %2098 = vst [vmem:[#allocation2 + $0x1a0] sm:$0xff] %v2011
    %2099 = vst [vmem:[#allocation2 + $0x1a8] sm:$0xff] %v2014
    %2100 = vst [vmem:[#allocation2 + $0x1b0] sm:$0xff] %v2017
    %2101 = vst [vmem:[#allocation2 + $0x1b8] sm:$0xff] %v2020
    %2102 = vst [vmem:[#allocation2 + $0x1c0] sm:$0xff] %v2023
    %2103 = vst [vmem:[#allocation2 + $0x1c8] sm:$0xff] %v2026
    %2104 = vst [vmem:[#allocation2 + $0x1d0] sm:$0xff] %v2029
    %2105 = vst [vmem:[#allocation2 + $0x1d8] sm:$0xff] %v2032
    %2106 = vst [vmem:[#allocation2 + $0x1e0] sm:$0xff] %v2035
    %2107 = vst [vmem:[#allocation2 + $0x1e8] sm:$0xff] %v2038
    %2108 = vst [vmem:[#allocation2 + $0x1f0] sm:$0xff] %v2041
    %2109 = vst [vmem:[#allocation2 + $0x1f8] sm:$0xff] %v2044
    // Predicated region
    $region22: #{tpu_custom_call.1} parent=1 // pred_check
      _
    $region23: #{tpu_custom_call.1} parent=1 // pred_check_branch
      %2111 = sbr.rel (0) target = $region25
    $region24: #{tpu_custom_call.1} parent=1 // pred_region
      %2113 = vsyncadd [#allocation3], 0
      %s2114 = sshll.u32 [#allocation2], 4
      %s2115 = int_to_ptr.vmem [resolvable:$true] %s2114
      %s2116 = sshll.u32 %s5, 4
      %s2117 = int_to_ptr.hbm [resolvable:$true] %s2116
      %2122 = dma.vmem_to_hbm [thread:$0]  %s2115, 8192, %s2117, [#allocation3], 128, 128, 8
    $region25: #{tpu_custom_call.1} parent=1 // pred_fallthru
      _
    // Predicated region
    $region26: #{tpu_custom_call.1} parent=1 // pred_check
      _
    $region27: #{tpu_custom_call.1} parent=1 // pred_check_branch
      %2124 = sbr.rel (0) target = $region29
    $region28: #{tpu_custom_call.1} parent=1 // pred_region
      %2126 = dma.done [#allocation3], 8192
    $region29: #{tpu_custom_call.1} parent=1 // pred_fallthru
      _
    %2127 = vsyncpa [#allocation3], 1

</llo_original>
